<compile_context>
chip_gen: v5e
topology: v5e:2x2
jax: 0.10.0
libtpu: 0.0.40
codegen_flags: <defaults>
</compile_context>

<pallas_src>
import numpy as np
import jax
import jax.numpy as jnp
from jax.experimental import pallas as pl
from jax.experimental.pallas import tpu as pltpu

# ---------------- configuration (consistent with CNN.__init__) ----------------
B, N_CH, N_TIMES, N_CLASSES = 2, 4, 128, 3
F1, D, F2, KERN_LEN = 8, 2, 16, 64
SEP_LEN, SEP_PAD = 16, 8
PAD = KERN_LEN // 2
FD = F1 * D                                   # 16 depthwise output channels
W1 = N_TIMES + 2 * PAD - KERN_LEN + 1         # 129 width after tempConv (col 128 unused)
WP1 = N_TIMES // 4                            # 32  width after pool1
P1_IN = WP1 * 4                               # 128 elements consumed by AvgPool(1,4)
WPAD = WP1 + 2 * SEP_PAD                      # 48  pool1 output + sepConv zero pad
W2 = WPAD - SEP_LEN + 1                       # 33  width after sepConv (col 32 unused)
T_OUT = W2 // 8                               # 4   width after pool2
P2_IN = T_OUT * 8                             # 32
BN_EPS = 1e-5
assert T_OUT == N_TIMES // 4 // 8, "Linear in_features mismatch"
assert P1_IN == N_TIMES                       # dep is exactly one 128-lane tile


def _elu(x):
    return jnp.where(x > 0, x, jnp.exp(jnp.minimum(x, 0.0)) - 1.0)


def cnn_kernel(x2_ref,       # (B*N_CH, 2*N_TIMES)   f32  raw input rows | zero tail
               wa_ref,       # (B*FD, KERN_LEN*B*N_CH) bf16 block-diag temp+depth (+bn1/bn2)
               p1_ref,       # (N_TIMES, N_TIMES)     f32  avg-pool-4 + sepConv zero-pad
               wsep_ref,     # (B*F2, SEP_LEN*B*FD)   bf16 block-diag sepConv (+bn3 scale)
               head_ref,     # (N_TIMES+B*F2, F2*C)   f32  rows 0..127 = hr (pool2+Linear,
                             #                             zero for t>=32), 128..159 = dmask
               bias_ref,     # (B*FD, 2)              f32  col0 stage-A bias, col1 bn3 shift
               scbl_ref,     # (F2*C+1, C)            f32  rows 0..47 class-sum sel, row 48 b_lin
               sb_ref,       # (B, B*F2)              f32  batch-block row-sum selector
               out_ref,      # (B, C)                 f32
               acol_scr,     # (KERN_LEN*B*N_CH, N_TIMES) bf16  stage-A im2col
               scol_scr):    # (SEP_LEN*B*FD, N_TIMES)    bf16  sepConv im2col
    f32, bf16 = jnp.float32, jnp.bfloat16

    # ---- stage-A im2col: 64 taps built with XLU rolls (full-width aligned stores) ----
    # x2 = [x | zeros]; rolling by (PAD - k) makes every out-of-range position land in
    # the zero half, so tempConv's zero padding comes for free.
    # (If a bundle dump ever shows spills here, wrap in lax.fori_loop(unroll=True).)
    x2 = x2_ref[...]                                            # (8, 256) f32
    for k in range(KERN_LEN):
        shift = (PAD - k) % (2 * N_TIMES)
        blk = x2 if shift == 0 else pltpu.roll(x2, shift=shift, axis=1)
        acol_scr[k * (B * N_CH):(k + 1) * (B * N_CH), :] = (
            blk[:, :N_TIMES].astype(bf16))

    # ---- tempConv + bn1 + depthConv + bn2 as ONE K=512 bf16 MXU matmul ----
    dep = jnp.dot(wa_ref[...], acol_scr[...],
                  preferred_element_type=f32)                   # (32, 128) lane-dense
    dep = _elu(dep + bias_ref[:, 0:1])

    # ---- pool1 (avg 4) + sepConv zero-padding fused into one f32 matmul ----
    padded = jnp.dot(dep, p1_ref[...],
                     preferred_element_type=f32)                # (32, 128): [0]*8|pool|0...

    # ---- sepConv im2col via width-128 rolls; wrap only touches cols >= 128-k >= 113,
    #      and only cols t < 48 are ever meaningful downstream (t < 32 consumed). ----
    for k in range(SEP_LEN):
        blk = padded if k == 0 else pltpu.roll(padded, shift=N_TIMES - k, axis=1)
        scol_scr[k * (B * FD):(k + 1) * (B * FD), :] = blk.astype(bf16)

    # ---- sepConv + bn3 as ONE K=512 bf16 MXU matmul ----
    sep = jnp.dot(wsep_ref[...], scol_scr[...],
                  preferred_element_type=f32)                   # (32, 128)
    sep = _elu(sep + bias_ref[:, 1:2])

    # ---- pool2 (avg 8) + Linear head: hr's zero rows (t >= 32) kill sep's junk
    #      columns, so no sub-tile slice of sep is needed. ----
    hr = head_ref[:N_TIMES, :]                                  # (128, 48)
    dmask = head_ref[N_TIMES:, :]                               # (32, 48)
    tmp = jnp.dot(sep, hr, preferred_element_type=f32)          # (32, 48)
    cls = jnp.dot(tmp * dmask, scbl_ref[:F2 * N_CLASSES, :],
                  preferred_element_type=f32)                   # (32, 3)
    out_ref[...] = (jnp.dot(sb_ref[...], cls, preferred_element_type=f32)
                    + scbl_ref[F2 * N_CLASSES:, :])


def prepare_params(params):
    """One-time host-side folding of all parameter-derived constants (perf item 3)."""
    f32 = np.float32
    wt = np.asarray(params['w_temp'], f32)      # (F1, KERN_LEN)
    wd = np.asarray(params['w_depth'], f32)     # (FD, N_CH)
    ws = np.asarray(params['w_sep'], f32)       # (F2, FD, SEP_LEN)
    wl = np.asarray(params['w_lin'], f32)       # (C, F2*T_OUT)
    blin = np.asarray(params['b_lin'], f32)
    s1, b1 = np.asarray(params['s1'], f32), np.asarray(params['b1'], f32)
    s2, b2 = np.asarray(params['s2'], f32), np.asarray(params['b2'], f32)
    s3, b3 = np.asarray(params['s3'], f32), np.asarray(params['b3'], f32)

    grp = np.arange(FD) // D
    # fused tempConv * bn1-scale * depthConv * bn2-scale weight, (oc, c, k)
    wa = (s2[:, None, None] * s1[grp][:, None, None]
          * wd[:, :, None] * wt[grp][:, None, :])               # (FD, N_CH, KERN_LEN)
    wa_t = np.transpose(wa, (0, 2, 1))                          # (FD, KERN_LEN, N_CH)
    big_a = np.zeros((B, FD, KERN_LEN, B, N_CH), f32)
    for b in range(B):
        big_a[b, :, :, b, :] = wa_t
    wa_bd = big_a.reshape(B * FD, KERN_LEN * B * N_CH)          # (32, 512)

    bias_a = np.tile(s2 * b1[grp] * wd.sum(axis=1) + b2, B)     # (32,)

    # pool1 matrix: avg-4 + sepConv zero padding, lane-padded to 128 output columns
    p1 = np.zeros((P1_IN, N_TIMES), f32)                        # (128, 128)
    p1[np.arange(P1_IN), SEP_PAD + np.arange(P1_IN) // 4] = 0.25

    # sepConv block-diag weight, bn3 scale folded, columns ordered (tap, batch, ch)
    ws_t = np.transpose(ws * s3[:, None, None], (0, 2, 1))      # (F2, SEP_LEN, FD)
    big_s = np.zeros((B, F2, SEP_LEN, B, FD), f32)
    for b in range(B):
        big_s[b, :, :, b, :] = ws_t
    wsep_bd = big_s.reshape(B * F2, SEP_LEN * B * FD)           # (32, 512)

    bias_sep = np.tile(b3, B)                                   # (32,)

    # pool2 (avg 8) folded into the Linear weight; rows t >= 32 are zero so the
    # sepConv output's junk columns contribute nothing.
    wlin3 = wl.reshape(N_CLASSES, F2, T_OUT)
    idx = np.arange(P2_IN) // 8
    hr = np.transpose(wlin3[:, :, idx], (2, 1, 0)).reshape(P2_IN, F2 * N_CLASSES) / 8.0
    hr128 = np.zeros((N_TIMES, F2 * N_CLASSES), f32)
    hr128[:P2_IN] = hr
    dmask = np.zeros((F2, F2 * N_CLASSES), f32)
    for f in range(F2):
        dmask[f, f * N_CLASSES:(f + 1) * N_CLASSES] = 1.0
    dmask = np.tile(dmask, (B, 1))                              # (32, 48)
    head = np.concatenate([hr128, dmask], axis=0)               # (160, 48)

    biases = np.stack([bias_a, bias_sep], axis=1)               # (32, 2)
    sc = np.tile(np.eye(N_CLASSES, dtype=f32), (F2, 1))         # (48, 3)
    scbl = np.concatenate([sc, blin.reshape(1, N_CLASSES)], 0)  # (49, 3)
    sb = np.kron(np.eye(B, dtype=f32), np.ones((1, F2), f32))   # (2, 32)

    return (jnp.asarray(wa_bd, dtype=jnp.bfloat16), jnp.asarray(p1),
            jnp.asarray(wsep_bd, dtype=jnp.bfloat16), jnp.asarray(head),
            jnp.asarray(biases), jnp.asarray(scbl), jnp.asarray(sb))


@jax.jit
def cnn_forward(x_nchw, prep):
    wa_bd, p1, wsep_bd, head, biases, scbl, sb = prep
    # Only per-call device work: a free reshape and a tiny zero-tail pad (8 KB total).
    x = x_nchw[:, 0].astype(jnp.float32).reshape(B * N_CH, N_TIMES)
    x2 = jnp.pad(x, ((0, 0), (0, N_TIMES)))                     # (8, 256): data | zeros
    args = (x2, wa_bd, p1, wsep_bd, head, biases, scbl, sb)
    vmem = lambda: pl.BlockSpec(memory_space=pltpu.MemorySpace.VMEM)
    return pl.pallas_call(
        cnn_kernel,
        out_shape=jax.ShapeDtypeStruct((B, N_CLASSES), jnp.float32),
        in_specs=[vmem() for _ in args],
        out_specs=vmem(),
        scratch_shapes=[pltpu.VMEM((KERN_LEN * B * N_CH, N_TIMES), jnp.bfloat16),
                        pltpu.VMEM((SEP_LEN * B * FD, N_TIMES), jnp.bfloat16)],
    )(*args)


# ---------------- pure-numpy reference (same eval-mode semantics) ----------------
def reference_forward(x_nchw, p):
    x = np.asarray(x_nchw, np.float32)[:, 0]
    xpad = np.pad(x, ((0, 0), (0, 0), (PAD, PAD)))
    wt = p['w_temp']
    temp = np.zeros((B, F1, N_CH, W1), np.float32)
    for k in range(KERN_LEN):
        temp += wt[None, :, None, k:k + 1] * xpad[:, None, :, k:k + W1]
    temp = temp * p['s1'][None, :, None, None] + p['b1'][None, :, None, None]
    wd = p['w_depth']
    dep = np.zeros((B, FD, W1), np.float32)
    for oc in range(FD):
        g = oc // D
        dep[:, oc] = (wd[oc][None, :, None] * temp[:, g]).sum(axis=1)
    dep = dep * p['s2'][None, :, None] + p['b2'][None, :, None]
    dep = np.where(dep > 0, dep, np.exp(np.minimum(dep, 0.0)) - 1.0)
    pooled = dep[:, :, :P1_IN].reshape(B, FD, WP1, 4).mean(axis=-1)
    padded = np.pad(pooled, ((0, 0), (0, 0), (SEP_PAD, SEP_PAD)))
    ws = p['w_sep']
    sep = np.zeros((B, F2, W2), np.float32)
    for k in range(SEP_LEN):
        sep += np.einsum('oc,bct->bot', ws[:, :, k], padded[:, :, k:k + W2])
    sep = sep * p['s3'][None, :, None] + p['b3'][None, :, None]
    sep = np.where(sep > 0, sep, np.exp(np.minimum(sep, 0.0)) - 1.0)
    pooled2 = sep[:, :, :P2_IN].reshape(B, F2, T_OUT, 8).mean(axis=-1)
    flat = pooled2.reshape(B, F2 * T_OUT)
    return flat @ p['w_lin'].T + p['b_lin'][None, :]


if __name__ == "__main__":
    key = jax.random.PRNGKey(0)
    ks = jax.random.split(key, 18)

    def kaiming(k, shape, fan_in):
        return jax.random.normal(k, shape, jnp.float32) * np.sqrt(2.0 / fan_in)

    def bn_fold(kg, kb, km, kv, c):
        gamma = 1.0 + 0.1 * jax.random.normal(kg, (c,), jnp.float32)
        beta = 0.1 * jax.random.normal(kb, (c,), jnp.float32)
        mean = 0.1 * jax.random.normal(km, (c,), jnp.float32)
        var = jax.random.uniform(kv, (c,), jnp.float32, minval=0.5, maxval=1.5)
        scale = gamma / jnp.sqrt(var + BN_EPS)
        shift = beta - mean * scale
        return scale, shift

    s1, b1 = bn_fold(ks[5], ks[6], ks[7], ks[8], F1)
    s2, b2 = bn_fold(ks[9], ks[10], ks[11], ks[12], FD)
    s3, b3 = bn_fold(ks[13], ks[14], ks[15], ks[16], F2)

    params = dict(
        w_temp=kaiming(ks[0], (F1, KERN_LEN), KERN_LEN),
        w_depth=kaiming(ks[1], (FD, N_CH), N_CH),
        w_sep=kaiming(ks[2], (F2, FD, SEP_LEN), FD * SEP_LEN),
        w_lin=kaiming(ks[3], (N_CLASSES, F2 * T_OUT), F2 * T_OUT),
        b_lin=0.1 * jax.random.normal(ks[4], (N_CLASSES,), jnp.float32),
        s1=s1, b1=b1, s2=s2, b2=b2, s3=s3, b3=b3,
    )

    x = jax.random.normal(ks[17], (B, 1, N_CH, N_TIMES), jnp.float32)

    prep = prepare_params(params)           # one-time constant folding (host side)
    out = cnn_forward(x, prep)
    out = jax.block_until_ready(out)

    ref = reference_forward(np.asarray(x), {k: np.asarray(v) for k, v in params.items()})
    # Tolerance sized for bf16 operands on the two K=512 matmuls (f32 accumulation)
    # compared against an all-f32 reference; any logic/indexing bug produces O(1) errors.
    np.testing.assert_allclose(np.asarray(out), ref, rtol=2e-2, atol=3e-2)
    print("KERNEL_OK")
</pallas_src>

<mosaic_0001>
module attributes {stable_mosaic.version = 11 : i64} {
  func.func @cnn_kernel(%arg0: memref<8x256xf32, #tpu.memory_space<vmem>>, %arg1: memref<32x512xbf16, #tpu.memory_space<vmem>>, %arg2: memref<128x128xf32, #tpu.memory_space<vmem>>, %arg3: memref<32x512xbf16, #tpu.memory_space<vmem>>, %arg4: memref<160x48xf32, #tpu.memory_space<vmem>>, %arg5: memref<32x2xf32, #tpu.memory_space<vmem>>, %arg6: memref<49x3xf32, #tpu.memory_space<vmem>>, %arg7: memref<2x32xf32, #tpu.memory_space<vmem>>, %arg8: memref<2x3xf32, #tpu.memory_space<vmem>>, %arg9: memref<512x128xbf16, #tpu.memory_space<vmem>>, %arg10: memref<512x128xbf16, #tpu.memory_space<vmem>>) attributes {dimension_semantics = [], scalar_prefetch = 0 : i64, scratch_operands = 2 : i64, tpu.core_type = #tpu.core_type<tc>} {
    %c0 = arith.constant 0 : index
    %c0_0 = arith.constant 0 : index
    %0 = vector.load %arg0[%c0, %c0_0] : memref<8x256xf32, #tpu.memory_space<vmem>>, vector<8x256xf32>
    %c32_i32 = arith.constant 32 : i32
    %1 = tpu.dynamic_rotate %0 by %c32_i32 dim 1 : vector<8x256xf32>, i32 -> vector<8x256xf32>
    %2 = vector.extract_strided_slice %1 {offsets = [0, 0], sizes = [8, 128], strides = [1, 1]} : vector<8x256xf32> to vector<8x128xf32>
    %3 = arith.truncf %2 : vector<8x128xf32> to vector<8x128xbf16>
    %c0_1 = arith.constant 0 : index
    %c0_2 = arith.constant 0 : index
    %4 = vector.load %arg9[%c0_1, %c0_2] : memref<512x128xbf16, #tpu.memory_space<vmem>>, vector<8x128xbf16>
    tpu.vector_store %arg9[%c0_1, %c0_2], %3 {strides = array<i32>} : memref<512x128xbf16, #tpu.memory_space<vmem>>, vector<8x128xbf16>,
    %c31_i32 = arith.constant 31 : i32
    %5 = tpu.dynamic_rotate %0 by %c31_i32 dim 1 : vector<8x256xf32>, i32 -> vector<8x256xf32>
    %6 = vector.extract_strided_slice %5 {offsets = [0, 0], sizes = [8, 128], strides = [1, 1]} : vector<8x256xf32> to vector<8x128xf32>
    %7 = arith.truncf %6 : vector<8x128xf32> to vector<8x128xbf16>
    %c8 = arith.constant 8 : index
    %c0_3 = arith.constant 0 : index
    %8 = vector.load %arg9[%c8, %c0_3] : memref<512x128xbf16, #tpu.memory_space<vmem>>, vector<8x128xbf16>
    tpu.vector_store %arg9[%c8, %c0_3], %7 {strides = array<i32>} : memref<512x128xbf16, #tpu.memory_space<vmem>>, vector<8x128xbf16>,
    %c30_i32 = arith.constant 30 : i32
    %9 = tpu.dynamic_rotate %0 by %c30_i32 dim 1 : vector<8x256xf32>, i32 -> vector<8x256xf32>
    %10 = vector.extract_strided_slice %9 {offsets = [0, 0], sizes = [8, 128], strides = [1, 1]} : vector<8x256xf32> to vector<8x128xf32>
    %11 = arith.truncf %10 : vector<8x128xf32> to vector<8x128xbf16>
    %c16 = arith.constant 16 : index
    %c0_4 = arith.constant 0 : index
    %12 = vector.load %arg9[%c16, %c0_4] : memref<512x128xbf16, #tpu.memory_space<vmem>>, vector<8x128xbf16>
    tpu.vector_store %arg9[%c16, %c0_4], %11 {strides = array<i32>} : memref<512x128xbf16, #tpu.memory_space<vmem>>, vector<8x128xbf16>,
    %c29_i32 = arith.constant 29 : i32
    %13 = tpu.dynamic_rotate %0 by %c29_i32 dim 1 : vector<8x256xf32>, i32 -> vector<8x256xf32>
    %14 = vector.extract_strided_slice %13 {offsets = [0, 0], sizes = [8, 128], strides = [1, 1]} : vector<8x256xf32> to vector<8x128xf32>
    %15 = arith.truncf %14 : vector<8x128xf32> to vector<8x128xbf16>
    %c24 = arith.constant 24 : index
    %c0_5 = arith.constant 0 : index
    %16 = vector.load %arg9[%c24, %c0_5] : memref<512x128xbf16, #tpu.memory_space<vmem>>, vector<8x128xbf16>
    tpu.vector_store %arg9[%c24, %c0_5], %15 {strides = array<i32>} : memref<512x128xbf16, #tpu.memory_space<vmem>>, vector<8x128xbf16>,
    %c28_i32 = arith.constant 28 : i32
    %17 = tpu.dynamic_rotate %0 by %c28_i32 dim 1 : vector<8x256xf32>, i32 -> vector<8x256xf32>
    %18 = vector.extract_strided_slice %17 {offsets = [0, 0], sizes = [8, 128], strides = [1, 1]} : vector<8x256xf32> to vector<8x128xf32>
    %19 = arith.truncf %18 : vector<8x128xf32> to vector<8x128xbf16>
    %c32 = arith.constant 32 : index
    %c0_6 = arith.constant 0 : index
    %20 = vector.load %arg9[%c32, %c0_6] : memref<512x128xbf16, #tpu.memory_space<vmem>>, vector<8x128xbf16>
    tpu.vector_store %arg9[%c32, %c0_6], %19 {strides = array<i32>} : memref<512x128xbf16, #tpu.memory_space<vmem>>, vector<8x128xbf16>,
    %c27_i32 = arith.constant 27 : i32
    %21 = tpu.dynamic_rotate %0 by %c27_i32 dim 1 : vector<8x256xf32>, i32 -> vector<8x256xf32>
    %22 = vector.extract_strided_slice %21 {offsets = [0, 0], sizes = [8, 128], strides = [1, 1]} : vector<8x256xf32> to vector<8x128xf32>
    %23 = arith.truncf %22 : vector<8x128xf32> to vector<8x128xbf16>
    %c40 = arith.constant 40 : index
    %c0_7 = arith.constant 0 : index
    %24 = vector.load %arg9[%c40, %c0_7] : memref<512x128xbf16, #tpu.memory_space<vmem>>, vector<8x128xbf16>
    tpu.vector_store %arg9[%c40, %c0_7], %23 {strides = array<i32>} : memref<512x128xbf16, #tpu.memory_space<vmem>>, vector<8x128xbf16>,
    %c26_i32 = arith.constant 26 : i32
    %25 = tpu.dynamic_rotate %0 by %c26_i32 dim 1 : vector<8x256xf32>, i32 -> vector<8x256xf32>
    %26 = vector.extract_strided_slice %25 {offsets = [0, 0], sizes = [8, 128], strides = [1, 1]} : vector<8x256xf32> to vector<8x128xf32>
    %27 = arith.truncf %26 : vector<8x128xf32> to vector<8x128xbf16>
    %c48 = arith.constant 48 : index
    %c0_8 = arith.constant 0 : index
    %28 = vector.load %arg9[%c48, %c0_8] : memref<512x128xbf16, #tpu.memory_space<vmem>>, vector<8x128xbf16>
    tpu.vector_store %arg9[%c48, %c0_8], %27 {strides = array<i32>} : memref<512x128xbf16, #tpu.memory_space<vmem>>, vector<8x128xbf16>,
    %c25_i32 = arith.constant 25 : i32
    %29 = tpu.dynamic_rotate %0 by %c25_i32 dim 1 : vector<8x256xf32>, i32 -> vector<8x256xf32>
    %30 = vector.extract_strided_slice %29 {offsets = [0, 0], sizes = [8, 128], strides = [1, 1]} : vector<8x256xf32> to vector<8x128xf32>
    %31 = arith.truncf %30 : vector<8x128xf32> to vector<8x128xbf16>
    %c56 = arith.constant 56 : index
    %c0_9 = arith.constant 0 : index
    %32 = vector.load %arg9[%c56, %c0_9] : memref<512x128xbf16, #tpu.memory_space<vmem>>, vector<8x128xbf16>
    tpu.vector_store %arg9[%c56, %c0_9], %31 {strides = array<i32>} : memref<512x128xbf16, #tpu.memory_space<vmem>>, vector<8x128xbf16>,
    %c24_i32 = arith.constant 24 : i32
    %33 = tpu.dynamic_rotate %0 by %c24_i32 dim 1 : vector<8x256xf32>, i32 -> vector<8x256xf32>
    %34 = vector.extract_strided_slice %33 {offsets = [0, 0], sizes = [8, 128], strides = [1, 1]} : vector<8x256xf32> to vector<8x128xf32>
    %35 = arith.truncf %34 : vector<8x128xf32> to vector<8x128xbf16>
    %c64 = arith.constant 64 : index
    %c0_10 = arith.constant 0 : index
    %36 = vector.load %arg9[%c64, %c0_10] : memref<512x128xbf16, #tpu.memory_space<vmem>>, vector<8x128xbf16>
    tpu.vector_store %arg9[%c64, %c0_10], %35 {strides = array<i32>} : memref<512x128xbf16, #tpu.memory_space<vmem>>, vector<8x128xbf16>,
    %c23_i32 = arith.constant 23 : i32
    %37 = tpu.dynamic_rotate %0 by %c23_i32 dim 1 : vector<8x256xf32>, i32 -> vector<8x256xf32>
    %38 = vector.extract_strided_slice %37 {offsets = [0, 0], sizes = [8, 128], strides = [1, 1]} : vector<8x256xf32> to vector<8x128xf32>
    %39 = arith.truncf %38 : vector<8x128xf32> to vector<8x128xbf16>
    %c72 = arith.constant 72 : index
    %c0_11 = arith.constant 0 : index
    %40 = vector.load %arg9[%c72, %c0_11] : memref<512x128xbf16, #tpu.memory_space<vmem>>, vector<8x128xbf16>
    tpu.vector_store %arg9[%c72, %c0_11], %39 {strides = array<i32>} : memref<512x128xbf16, #tpu.memory_space<vmem>>, vector<8x128xbf16>,
    %c22_i32 = arith.constant 22 : i32
    %41 = tpu.dynamic_rotate %0 by %c22_i32 dim 1 : vector<8x256xf32>, i32 -> vector<8x256xf32>
    %42 = vector.extract_strided_slice %41 {offsets = [0, 0], sizes = [8, 128], strides = [1, 1]} : vector<8x256xf32> to vector<8x128xf32>
    %43 = arith.truncf %42 : vector<8x128xf32> to vector<8x128xbf16>
    %c80 = arith.constant 80 : index
    %c0_12 = arith.constant 0 : index
    %44 = vector.load %arg9[%c80, %c0_12] : memref<512x128xbf16, #tpu.memory_space<vmem>>, vector<8x128xbf16>
    tpu.vector_store %arg9[%c80, %c0_12], %43 {strides = array<i32>} : memref<512x128xbf16, #tpu.memory_space<vmem>>, vector<8x128xbf16>,
    %c21_i32 = arith.constant 21 : i32
    %45 = tpu.dynamic_rotate %0 by %c21_i32 dim 1 : vector<8x256xf32>, i32 -> vector<8x256xf32>
    %46 = vector.extract_strided_slice %45 {offsets = [0, 0], sizes = [8, 128], strides = [1, 1]} : vector<8x256xf32> to vector<8x128xf32>
    %47 = arith.truncf %46 : vector<8x128xf32> to vector<8x128xbf16>
    %c88 = arith.constant 88 : index
    %c0_13 = arith.constant 0 : index
    %48 = vector.load %arg9[%c88, %c0_13] : memref<512x128xbf16, #tpu.memory_space<vmem>>, vector<8x128xbf16>
    tpu.vector_store %arg9[%c88, %c0_13], %47 {strides = array<i32>} : memref<512x128xbf16, #tpu.memory_space<vmem>>, vector<8x128xbf16>,
    %c20_i32 = arith.constant 20 : i32
    %49 = tpu.dynamic_rotate %0 by %c20_i32 dim 1 : vector<8x256xf32>, i32 -> vector<8x256xf32>
    %50 = vector.extract_strided_slice %49 {offsets = [0, 0], sizes = [8, 128], strides = [1, 1]} : vector<8x256xf32> to vector<8x128xf32>
    %51 = arith.truncf %50 : vector<8x128xf32> to vector<8x128xbf16>
    %c96 = arith.constant 96 : index
    %c0_14 = arith.constant 0 : index
    %52 = vector.load %arg9[%c96, %c0_14] : memref<512x128xbf16, #tpu.memory_space<vmem>>, vector<8x128xbf16>
    tpu.vector_store %arg9[%c96, %c0_14], %51 {strides = array<i32>} : memref<512x128xbf16, #tpu.memory_space<vmem>>, vector<8x128xbf16>,
    %c19_i32 = arith.constant 19 : i32
    %53 = tpu.dynamic_rotate %0 by %c19_i32 dim 1 : vector<8x256xf32>, i32 -> vector<8x256xf32>
    %54 = vector.extract_strided_slice %53 {offsets = [0, 0], sizes = [8, 128], strides = [1, 1]} : vector<8x256xf32> to vector<8x128xf32>
    %55 = arith.truncf %54 : vector<8x128xf32> to vector<8x128xbf16>
    %c104 = arith.constant 104 : index
    %c0_15 = arith.constant 0 : index
    %56 = vector.load %arg9[%c104, %c0_15] : memref<512x128xbf16, #tpu.memory_space<vmem>>, vector<8x128xbf16>
    tpu.vector_store %arg9[%c104, %c0_15], %55 {strides = array<i32>} : memref<512x128xbf16, #tpu.memory_space<vmem>>, vector<8x128xbf16>,
    %c18_i32 = arith.constant 18 : i32
    %57 = tpu.dynamic_rotate %0 by %c18_i32 dim 1 : vector<8x256xf32>, i32 -> vector<8x256xf32>
    %58 = vector.extract_strided_slice %57 {offsets = [0, 0], sizes = [8, 128], strides = [1, 1]} : vector<8x256xf32> to vector<8x128xf32>
    %59 = arith.truncf %58 : vector<8x128xf32> to vector<8x128xbf16>
    %c112 = arith.constant 112 : index
    %c0_16 = arith.constant 0 : index
    %60 = vector.load %arg9[%c112, %c0_16] : memref<512x128xbf16, #tpu.memory_space<vmem>>, vector<8x128xbf16>
    tpu.vector_store %arg9[%c112, %c0_16], %59 {strides = array<i32>} : memref<512x128xbf16, #tpu.memory_space<vmem>>, vector<8x128xbf16>,
    %c17_i32 = arith.constant 17 : i32
    %61 = tpu.dynamic_rotate %0 by %c17_i32 dim 1 : vector<8x256xf32>, i32 -> vector<8x256xf32>
    %62 = vector.extract_strided_slice %61 {offsets = [0, 0], sizes = [8, 128], strides = [1, 1]} : vector<8x256xf32> to vector<8x128xf32>
    %63 = arith.truncf %62 : vector<8x128xf32> to vector<8x128xbf16>
    %c120 = arith.constant 120 : index
    %c0_17 = arith.constant 0 : index
    %64 = vector.load %arg9[%c120, %c0_17] : memref<512x128xbf16, #tpu.memory_space<vmem>>, vector<8x128xbf16>
    tpu.vector_store %arg9[%c120, %c0_17], %63 {strides = array<i32>} : memref<512x128xbf16, #tpu.memory_space<vmem>>, vector<8x128xbf16>,
    %c16_i32 = arith.constant 16 : i32
    %65 = tpu.dynamic_rotate %0 by %c16_i32 dim 1 : vector<8x256xf32>, i32 -> vector<8x256xf32>
    %66 = vector.extract_strided_slice %65 {offsets = [0, 0], sizes = [8, 128], strides = [1, 1]} : vector<8x256xf32> to vector<8x128xf32>
    %67 = arith.truncf %66 : vector<8x128xf32> to vector<8x128xbf16>
    %c128 = arith.constant 128 : index
    %c0_18 = arith.constant 0 : index
    %68 = vector.load %arg9[%c128, %c0_18] : memref<512x128xbf16, #tpu.memory_space<vmem>>, vector<8x128xbf16>
    tpu.vector_store %arg9[%c128, %c0_18], %67 {strides = array<i32>} : memref<512x128xbf16, #tpu.memory_space<vmem>>, vector<8x128xbf16>,
    %c15_i32 = arith.constant 15 : i32
    %69 = tpu.dynamic_rotate %0 by %c15_i32 dim 1 : vector<8x256xf32>, i32 -> vector<8x256xf32>
    %70 = vector.extract_strided_slice %69 {offsets = [0, 0], sizes = [8, 128], strides = [1, 1]} : vector<8x256xf32> to vector<8x128xf32>
    %71 = arith.truncf %70 : vector<8x128xf32> to vector<8x128xbf16>
    %c136 = arith.constant 136 : index
    %c0_19 = arith.constant 0 : index
    %72 = vector.load %arg9[%c136, %c0_19] : memref<512x128xbf16, #tpu.memory_space<vmem>>, vector<8x128xbf16>
    tpu.vector_store %arg9[%c136, %c0_19], %71 {strides = array<i32>} : memref<512x128xbf16, #tpu.memory_space<vmem>>, vector<8x128xbf16>,
    %c14_i32 = arith.constant 14 : i32
    %73 = tpu.dynamic_rotate %0 by %c14_i32 dim 1 : vector<8x256xf32>, i32 -> vector<8x256xf32>
    %74 = vector.extract_strided_slice %73 {offsets = [0, 0], sizes = [8, 128], strides = [1, 1]} : vector<8x256xf32> to vector<8x128xf32>
    %75 = arith.truncf %74 : vector<8x128xf32> to vector<8x128xbf16>
    %c144 = arith.constant 144 : index
    %c0_20 = arith.constant 0 : index
    %76 = vector.load %arg9[%c144, %c0_20] : memref<512x128xbf16, #tpu.memory_space<vmem>>, vector<8x128xbf16>
    tpu.vector_store %arg9[%c144, %c0_20], %75 {strides = array<i32>} : memref<512x128xbf16, #tpu.memory_space<vmem>>, vector<8x128xbf16>,
    %c13_i32 = arith.constant 13 : i32
    %77 = tpu.dynamic_rotate %0 by %c13_i32 dim 1 : vector<8x256xf32>, i32 -> vector<8x256xf32>
    %78 = vector.extract_strided_slice %77 {offsets = [0, 0], sizes = [8, 128], strides = [1, 1]} : vector<8x256xf32> to vector<8x128xf32>
    %79 = arith.truncf %78 : vector<8x128xf32> to vector<8x128xbf16>
    %c152 = arith.constant 152 : index
    %c0_21 = arith.constant 0 : index
    %80 = vector.load %arg9[%c152, %c0_21] : memref<512x128xbf16, #tpu.memory_space<vmem>>, vector<8x128xbf16>
    tpu.vector_store %arg9[%c152, %c0_21], %79 {strides = array<i32>} : memref<512x128xbf16, #tpu.memory_space<vmem>>, vector<8x128xbf16>,
    %c12_i32 = arith.constant 12 : i32
    %81 = tpu.dynamic_rotate %0 by %c12_i32 dim 1 : vector<8x256xf32>, i32 -> vector<8x256xf32>
    %82 = vector.extract_strided_slice %81 {offsets = [0, 0], sizes = [8, 128], strides = [1, 1]} : vector<8x256xf32> to vector<8x128xf32>
    %83 = arith.truncf %82 : vector<8x128xf32> to vector<8x128xbf16>
    %c160 = arith.constant 160 : index
    %c0_22 = arith.constant 0 : index
    %84 = vector.load %arg9[%c160, %c0_22] : memref<512x128xbf16, #tpu.memory_space<vmem>>, vector<8x128xbf16>
    tpu.vector_store %arg9[%c160, %c0_22], %83 {strides = array<i32>} : memref<512x128xbf16, #tpu.memory_space<vmem>>, vector<8x128xbf16>,
    %c11_i32 = arith.constant 11 : i32
    %85 = tpu.dynamic_rotate %0 by %c11_i32 dim 1 : vector<8x256xf32>, i32 -> vector<8x256xf32>
    %86 = vector.extract_strided_slice %85 {offsets = [0, 0], sizes = [8, 128], strides = [1, 1]} : vector<8x256xf32> to vector<8x128xf32>
    %87 = arith.truncf %86 : vector<8x128xf32> to vector<8x128xbf16>
    %c168 = arith.constant 168 : index
    %c0_23 = arith.constant 0 : index
    %88 = vector.load %arg9[%c168, %c0_23] : memref<512x128xbf16, #tpu.memory_space<vmem>>, vector<8x128xbf16>
    tpu.vector_store %arg9[%c168, %c0_23], %87 {strides = array<i32>} : memref<512x128xbf16, #tpu.memory_space<vmem>>, vector<8x128xbf16>,
    %c10_i32 = arith.constant 10 : i32
    %89 = tpu.dynamic_rotate %0 by %c10_i32 dim 1 : vector<8x256xf32>, i32 -> vector<8x256xf32>
    %90 = vector.extract_strided_slice %89 {offsets = [0, 0], sizes = [8, 128], strides = [1, 1]} : vector<8x256xf32> to vector<8x128xf32>
    %91 = arith.truncf %90 : vector<8x128xf32> to vector<8x128xbf16>
    %c176 = arith.constant 176 : index
    %c0_24 = arith.constant 0 : index
    %92 = vector.load %arg9[%c176, %c0_24] : memref<512x128xbf16, #tpu.memory_space<vmem>>, vector<8x128xbf16>
    tpu.vector_store %arg9[%c176, %c0_24], %91 {strides = array<i32>} : memref<512x128xbf16, #tpu.memory_space<vmem>>, vector<8x128xbf16>,
    %c9_i32 = arith.constant 9 : i32
    %93 = tpu.dynamic_rotate %0 by %c9_i32 dim 1 : vector<8x256xf32>, i32 -> vector<8x256xf32>
    %94 = vector.extract_strided_slice %93 {offsets = [0, 0], sizes = [8, 128], strides = [1, 1]} : vector<8x256xf32> to vector<8x128xf32>
    %95 = arith.truncf %94 : vector<8x128xf32> to vector<8x128xbf16>
    %c184 = arith.constant 184 : index
    %c0_25 = arith.constant 0 : index
    %96 = vector.load %arg9[%c184, %c0_25] : memref<512x128xbf16, #tpu.memory_space<vmem>>, vector<8x128xbf16>
    tpu.vector_store %arg9[%c184, %c0_25], %95 {strides = array<i32>} : memref<512x128xbf16, #tpu.memory_space<vmem>>, vector<8x128xbf16>,
    %c8_i32 = arith.constant 8 : i32
    %97 = tpu.dynamic_rotate %0 by %c8_i32 dim 1 : vector<8x256xf32>, i32 -> vector<8x256xf32>
    %98 = vector.extract_strided_slice %97 {offsets = [0, 0], sizes = [8, 128], strides = [1, 1]} : vector<8x256xf32> to vector<8x128xf32>
    %99 = arith.truncf %98 : vector<8x128xf32> to vector<8x128xbf16>
    %c192 = arith.constant 192 : index
    %c0_26 = arith.constant 0 : index
    %100 = vector.load %arg9[%c192, %c0_26] : memref<512x128xbf16, #tpu.memory_space<vmem>>, vector<8x128xbf16>
    tpu.vector_store %arg9[%c192, %c0_26], %99 {strides = array<i32>} : memref<512x128xbf16, #tpu.memory_space<vmem>>, vector<8x128xbf16>,
    %c7_i32 = arith.constant 7 : i32
    %101 = tpu.dynamic_rotate %0 by %c7_i32 dim 1 : vector<8x256xf32>, i32 -> vector<8x256xf32>
    %102 = vector.extract_strided_slice %101 {offsets = [0, 0], sizes = [8, 128], strides = [1, 1]} : vector<8x256xf32> to vector<8x128xf32>
    %103 = arith.truncf %102 : vector<8x128xf32> to vector<8x128xbf16>
    %c200 = arith.constant 200 : index
    %c0_27 = arith.constant 0 : index
    %104 = vector.load %arg9[%c200, %c0_27] : memref<512x128xbf16, #tpu.memory_space<vmem>>, vector<8x128xbf16>
    tpu.vector_store %arg9[%c200, %c0_27], %103 {strides = array<i32>} : memref<512x128xbf16, #tpu.memory_space<vmem>>, vector<8x128xbf16>,
    %c6_i32 = arith.constant 6 : i32
    %105 = tpu.dynamic_rotate %0 by %c6_i32 dim 1 : vector<8x256xf32>, i32 -> vector<8x256xf32>
    %106 = vector.extract_strided_slice %105 {offsets = [0, 0], sizes = [8, 128], strides = [1, 1]} : vector<8x256xf32> to vector<8x128xf32>
    %107 = arith.truncf %106 : vector<8x128xf32> to vector<8x128xbf16>
    %c208 = arith.constant 208 : index
    %c0_28 = arith.constant 0 : index
    %108 = vector.load %arg9[%c208, %c0_28] : memref<512x128xbf16, #tpu.memory_space<vmem>>, vector<8x128xbf16>
    tpu.vector_store %arg9[%c208, %c0_28], %107 {strides = array<i32>} : memref<512x128xbf16, #tpu.memory_space<vmem>>, vector<8x128xbf16>,
    %c5_i32 = arith.constant 5 : i32
    %109 = tpu.dynamic_rotate %0 by %c5_i32 dim 1 : vector<8x256xf32>, i32 -> vector<8x256xf32>
    %110 = vector.extract_strided_slice %109 {offsets = [0, 0], sizes = [8, 128], strides = [1, 1]} : vector<8x256xf32> to vector<8x128xf32>
    %111 = arith.truncf %110 : vector<8x128xf32> to vector<8x128xbf16>
    %c216 = arith.constant 216 : index
    %c0_29 = arith.constant 0 : index
    %112 = vector.load %arg9[%c216, %c0_29] : memref<512x128xbf16, #tpu.memory_space<vmem>>, vector<8x128xbf16>
    tpu.vector_store %arg9[%c216, %c0_29], %111 {strides = array<i32>} : memref<512x128xbf16, #tpu.memory_space<vmem>>, vector<8x128xbf16>,
    %c4_i32 = arith.constant 4 : i32
    %113 = tpu.dynamic_rotate %0 by %c4_i32 dim 1 : vector<8x256xf32>, i32 -> vector<8x256xf32>
    %114 = vector.extract_strided_slice %113 {offsets = [0, 0], sizes = [8, 128], strides = [1, 1]} : vector<8x256xf32> to vector<8x128xf32>
    %115 = arith.truncf %114 : vector<8x128xf32> to vector<8x128xbf16>
    %c224 = arith.constant 224 : index
    %c0_30 = arith.constant 0 : index
    %116 = vector.load %arg9[%c224, %c0_30] : memref<512x128xbf16, #tpu.memory_space<vmem>>, vector<8x128xbf16>
    tpu.vector_store %arg9[%c224, %c0_30], %115 {strides = array<i32>} : memref<512x128xbf16, #tpu.memory_space<vmem>>, vector<8x128xbf16>,
    %c3_i32 = arith.constant 3 : i32
    %117 = tpu.dynamic_rotate %0 by %c3_i32 dim 1 : vector<8x256xf32>, i32 -> vector<8x256xf32>
    %118 = vector.extract_strided_slice %117 {offsets = [0, 0], sizes = [8, 128], strides = [1, 1]} : vector<8x256xf32> to vector<8x128xf32>
    %119 = arith.truncf %118 : vector<8x128xf32> to vector<8x128xbf16>
    %c232 = arith.constant 232 : index
    %c0_31 = arith.constant 0 : index
    %120 = vector.load %arg9[%c232, %c0_31] : memref<512x128xbf16, #tpu.memory_space<vmem>>, vector<8x128xbf16>
    tpu.vector_store %arg9[%c232, %c0_31], %119 {strides = array<i32>} : memref<512x128xbf16, #tpu.memory_space<vmem>>, vector<8x128xbf16>,
    %c2_i32 = arith.constant 2 : i32
    %121 = tpu.dynamic_rotate %0 by %c2_i32 dim 1 : vector<8x256xf32>, i32 -> vector<8x256xf32>
    %122 = vector.extract_strided_slice %121 {offsets = [0, 0], sizes = [8, 128], strides = [1, 1]} : vector<8x256xf32> to vector<8x128xf32>
    %123 = arith.truncf %122 : vector<8x128xf32> to vector<8x128xbf16>
    %c240 = arith.constant 240 : index
    %c0_32 = arith.constant 0 : index
    %124 = vector.load %arg9[%c240, %c0_32] : memref<512x128xbf16, #tpu.memory_space<vmem>>, vector<8x128xbf16>
    tpu.vector_store %arg9[%c240, %c0_32], %123 {strides = array<i32>} : memref<512x128xbf16, #tpu.memory_space<vmem>>, vector<8x128xbf16>,
    %c1_i32 = arith.constant 1 : i32
    %125 = tpu.dynamic_rotate %0 by %c1_i32 dim 1 : vector<8x256xf32>, i32 -> vector<8x256xf32>
    %126 = vector.extract_strided_slice %125 {offsets = [0, 0], sizes = [8, 128], strides = [1, 1]} : vector<8x256xf32> to vector<8x128xf32>
    %127 = arith.truncf %126 : vector<8x128xf32> to vector<8x128xbf16>
    %c248 = arith.constant 248 : index
    %c0_33 = arith.constant 0 : index
    %128 = vector.load %arg9[%c248, %c0_33] : memref<512x128xbf16, #tpu.memory_space<vmem>>, vector<8x128xbf16>
    tpu.vector_store %arg9[%c248, %c0_33], %127 {strides = array<i32>} : memref<512x128xbf16, #tpu.memory_space<vmem>>, vector<8x128xbf16>,
    %129 = vector.extract_strided_slice %0 {offsets = [0, 0], sizes = [8, 128], strides = [1, 1]} : vector<8x256xf32> to vector<8x128xf32>
    %130 = arith.truncf %129 : vector<8x128xf32> to vector<8x128xbf16>
    %c256 = arith.constant 256 : index
    %c0_34 = arith.constant 0 : index
    %131 = vector.load %arg9[%c256, %c0_34] : memref<512x128xbf16, #tpu.memory_space<vmem>>, vector<8x128xbf16>
    tpu.vector_store %arg9[%c256, %c0_34], %130 {strides = array<i32>} : memref<512x128xbf16, #tpu.memory_space<vmem>>, vector<8x128xbf16>,
    %c255_i32 = arith.constant 255 : i32
    %132 = tpu.dynamic_rotate %0 by %c255_i32 dim 1 : vector<8x256xf32>, i32 -> vector<8x256xf32>
    %133 = vector.extract_strided_slice %132 {offsets = [0, 0], sizes = [8, 128], strides = [1, 1]} : vector<8x256xf32> to vector<8x128xf32>
    %134 = arith.truncf %133 : vector<8x128xf32> to vector<8x128xbf16>
    %c264 = arith.constant 264 : index
    %c0_35 = arith.constant 0 : index
    %135 = vector.load %arg9[%c264, %c0_35] : memref<512x128xbf16, #tpu.memory_space<vmem>>, vector<8x128xbf16>
    tpu.vector_store %arg9[%c264, %c0_35], %134 {strides = array<i32>} : memref<512x128xbf16, #tpu.memory_space<vmem>>, vector<8x128xbf16>,
    %c254_i32 = arith.constant 254 : i32
    %136 = tpu.dynamic_rotate %0 by %c254_i32 dim 1 : vector<8x256xf32>, i32 -> vector<8x256xf32>
    %137 = vector.extract_strided_slice %136 {offsets = [0, 0], sizes = [8, 128], strides = [1, 1]} : vector<8x256xf32> to vector<8x128xf32>
    %138 = arith.truncf %137 : vector<8x128xf32> to vector<8x128xbf16>
    %c272 = arith.constant 272 : index
    %c0_36 = arith.constant 0 : index
    %139 = vector.load %arg9[%c272, %c0_36] : memref<512x128xbf16, #tpu.memory_space<vmem>>, vector<8x128xbf16>
    tpu.vector_store %arg9[%c272, %c0_36], %138 {strides = array<i32>} : memref<512x128xbf16, #tpu.memory_space<vmem>>, vector<8x128xbf16>,
    %c253_i32 = arith.constant 253 : i32
    %140 = tpu.dynamic_rotate %0 by %c253_i32 dim 1 : vector<8x256xf32>, i32 -> vector<8x256xf32>
    %141 = vector.extract_strided_slice %140 {offsets = [0, 0], sizes = [8, 128], strides = [1, 1]} : vector<8x256xf32> to vector<8x128xf32>
    %142 = arith.truncf %141 : vector<8x128xf32> to vector<8x128xbf16>
    %c280 = arith.constant 280 : index
    %c0_37 = arith.constant 0 : index
    %143 = vector.load %arg9[%c280, %c0_37] : memref<512x128xbf16, #tpu.memory_space<vmem>>, vector<8x128xbf16>
    tpu.vector_store %arg9[%c280, %c0_37], %142 {strides = array<i32>} : memref<512x128xbf16, #tpu.memory_space<vmem>>, vector<8x128xbf16>,
    %c252_i32 = arith.constant 252 : i32
    %144 = tpu.dynamic_rotate %0 by %c252_i32 dim 1 : vector<8x256xf32>, i32 -> vector<8x256xf32>
    %145 = vector.extract_strided_slice %144 {offsets = [0, 0], sizes = [8, 128], strides = [1, 1]} : vector<8x256xf32> to vector<8x128xf32>
    %146 = arith.truncf %145 : vector<8x128xf32> to vector<8x128xbf16>
    %c288 = arith.constant 288 : index
    %c0_38 = arith.constant 0 : index
    %147 = vector.load %arg9[%c288, %c0_38] : memref<512x128xbf16, #tpu.memory_space<vmem>>, vector<8x128xbf16>
    tpu.vector_store %arg9[%c288, %c0_38], %146 {strides = array<i32>} : memref<512x128xbf16, #tpu.memory_space<vmem>>, vector<8x128xbf16>,
    %c251_i32 = arith.constant 251 : i32
    %148 = tpu.dynamic_rotate %0 by %c251_i32 dim 1 : vector<8x256xf32>, i32 -> vector<8x256xf32>
    %149 = vector.extract_strided_slice %148 {offsets = [0, 0], sizes = [8, 128], strides = [1, 1]} : vector<8x256xf32> to vector<8x128xf32>
    %150 = arith.truncf %149 : vector<8x128xf32> to vector<8x128xbf16>
    %c296 = arith.constant 296 : index
    %c0_39 = arith.constant 0 : index
    %151 = vector.load %arg9[%c296, %c0_39] : memref<512x128xbf16, #tpu.memory_space<vmem>>, vector<8x128xbf16>
    tpu.vector_store %arg9[%c296, %c0_39], %150 {strides = array<i32>} : memref<512x128xbf16, #tpu.memory_space<vmem>>, vector<8x128xbf16>,
    %c250_i32 = arith.constant 250 : i32
    %152 = tpu.dynamic_rotate %0 by %c250_i32 dim 1 : vector<8x256xf32>, i32 -> vector<8x256xf32>
    %153 = vector.extract_strided_slice %152 {offsets = [0, 0], sizes = [8, 128], strides = [1, 1]} : vector<8x256xf32> to vector<8x128xf32>
    %154 = arith.truncf %153 : vector<8x128xf32> to vector<8x128xbf16>
    %c304 = arith.constant 304 : index
    %c0_40 = arith.constant 0 : index
    %155 = vector.load %arg9[%c304, %c0_40] : memref<512x128xbf16, #tpu.memory_space<vmem>>, vector<8x128xbf16>
    tpu.vector_store %arg9[%c304, %c0_40], %154 {strides = array<i32>} : memref<512x128xbf16, #tpu.memory_space<vmem>>, vector<8x128xbf16>,
    %c249_i32 = arith.constant 249 : i32
    %156 = tpu.dynamic_rotate %0 by %c249_i32 dim 1 : vector<8x256xf32>, i32 -> vector<8x256xf32>
    %157 = vector.extract_strided_slice %156 {offsets = [0, 0], sizes = [8, 128], strides = [1, 1]} : vector<8x256xf32> to vector<8x128xf32>
    %158 = arith.truncf %157 : vector<8x128xf32> to vector<8x128xbf16>
    %c312 = arith.constant 312 : index
    %c0_41 = arith.constant 0 : index
    %159 = vector.load %arg9[%c312, %c0_41] : memref<512x128xbf16, #tpu.memory_space<vmem>>, vector<8x128xbf16>
    tpu.vector_store %arg9[%c312, %c0_41], %158 {strides = array<i32>} : memref<512x128xbf16, #tpu.memory_space<vmem>>, vector<8x128xbf16>,
    %c248_i32 = arith.constant 248 : i32
    %160 = tpu.dynamic_rotate %0 by %c248_i32 dim 1 : vector<8x256xf32>, i32 -> vector<8x256xf32>
    %161 = vector.extract_strided_slice %160 {offsets = [0, 0], sizes = [8, 128], strides = [1, 1]} : vector<8x256xf32> to vector<8x128xf32>
    %162 = arith.truncf %161 : vector<8x128xf32> to vector<8x128xbf16>
    %c320 = arith.constant 320 : index
    %c0_42 = arith.constant 0 : index
    %163 = vector.load %arg9[%c320, %c0_42] : memref<512x128xbf16, #tpu.memory_space<vmem>>, vector<8x128xbf16>
    tpu.vector_store %arg9[%c320, %c0_42], %162 {strides = array<i32>} : memref<512x128xbf16, #tpu.memory_space<vmem>>, vector<8x128xbf16>,
    %c247_i32 = arith.constant 247 : i32
    %164 = tpu.dynamic_rotate %0 by %c247_i32 dim 1 : vector<8x256xf32>, i32 -> vector<8x256xf32>
    %165 = vector.extract_strided_slice %164 {offsets = [0, 0], sizes = [8, 128], strides = [1, 1]} : vector<8x256xf32> to vector<8x128xf32>
    %166 = arith.truncf %165 : vector<8x128xf32> to vector<8x128xbf16>
    %c328 = arith.constant 328 : index
    %c0_43 = arith.constant 0 : index
    %167 = vector.load %arg9[%c328, %c0_43] : memref<512x128xbf16, #tpu.memory_space<vmem>>, vector<8x128xbf16>
    tpu.vector_store %arg9[%c328, %c0_43], %166 {strides = array<i32>} : memref<512x128xbf16, #tpu.memory_space<vmem>>, vector<8x128xbf16>,
    %c246_i32 = arith.constant 246 : i32
    %168 = tpu.dynamic_rotate %0 by %c246_i32 dim 1 : vector<8x256xf32>, i32 -> vector<8x256xf32>
    %169 = vector.extract_strided_slice %168 {offsets = [0, 0], sizes = [8, 128], strides = [1, 1]} : vector<8x256xf32> to vector<8x128xf32>
    %170 = arith.truncf %169 : vector<8x128xf32> to vector<8x128xbf16>
    %c336 = arith.constant 336 : index
    %c0_44 = arith.constant 0 : index
    %171 = vector.load %arg9[%c336, %c0_44] : memref<512x128xbf16, #tpu.memory_space<vmem>>, vector<8x128xbf16>
    tpu.vector_store %arg9[%c336, %c0_44], %170 {strides = array<i32>} : memref<512x128xbf16, #tpu.memory_space<vmem>>, vector<8x128xbf16>,
    %c245_i32 = arith.constant 245 : i32
    %172 = tpu.dynamic_rotate %0 by %c245_i32 dim 1 : vector<8x256xf32>, i32 -> vector<8x256xf32>
    %173 = vector.extract_strided_slice %172 {offsets = [0, 0], sizes = [8, 128], strides = [1, 1]} : vector<8x256xf32> to vector<8x128xf32>
    %174 = arith.truncf %173 : vector<8x128xf32> to vector<8x128xbf16>
    %c344 = arith.constant 344 : index
    %c0_45 = arith.constant 0 : index
    %175 = vector.load %arg9[%c344, %c0_45] : memref<512x128xbf16, #tpu.memory_space<vmem>>, vector<8x128xbf16>
    tpu.vector_store %arg9[%c344, %c0_45], %174 {strides = array<i32>} : memref<512x128xbf16, #tpu.memory_space<vmem>>, vector<8x128xbf16>,
    %c244_i32 = arith.constant 244 : i32
    %176 = tpu.dynamic_rotate %0 by %c244_i32 dim 1 : vector<8x256xf32>, i32 -> vector<8x256xf32>
    %177 = vector.extract_strided_slice %176 {offsets = [0, 0], sizes = [8, 128], strides = [1, 1]} : vector<8x256xf32> to vector<8x128xf32>
    %178 = arith.truncf %177 : vector<8x128xf32> to vector<8x128xbf16>
    %c352 = arith.constant 352 : index
    %c0_46 = arith.constant 0 : index
    %179 = vector.load %arg9[%c352, %c0_46] : memref<512x128xbf16, #tpu.memory_space<vmem>>, vector<8x128xbf16>
    tpu.vector_store %arg9[%c352, %c0_46], %178 {strides = array<i32>} : memref<512x128xbf16, #tpu.memory_space<vmem>>, vector<8x128xbf16>,
    %c243_i32 = arith.constant 243 : i32
    %180 = tpu.dynamic_rotate %0 by %c243_i32 dim 1 : vector<8x256xf32>, i32 -> vector<8x256xf32>
    %181 = vector.extract_strided_slice %180 {offsets = [0, 0], sizes = [8, 128], strides = [1, 1]} : vector<8x256xf32> to vector<8x128xf32>
    %182 = arith.truncf %181 : vector<8x128xf32> to vector<8x128xbf16>
    %c360 = arith.constant 360 : index
    %c0_47 = arith.constant 0 : index
    %183 = vector.load %arg9[%c360, %c0_47] : memref<512x128xbf16, #tpu.memory_space<vmem>>, vector<8x128xbf16>
    tpu.vector_store %arg9[%c360, %c0_47], %182 {strides = array<i32>} : memref<512x128xbf16, #tpu.memory_space<vmem>>, vector<8x128xbf16>,
    %c242_i32 = arith.constant 242 : i32
    %184 = tpu.dynamic_rotate %0 by %c242_i32 dim 1 : vector<8x256xf32>, i32 -> vector<8x256xf32>
    %185 = vector.extract_strided_slice %184 {offsets = [0, 0], sizes = [8, 128], strides = [1, 1]} : vector<8x256xf32> to vector<8x128xf32>
    %186 = arith.truncf %185 : vector<8x128xf32> to vector<8x128xbf16>
    %c368 = arith.constant 368 : index
    %c0_48 = arith.constant 0 : index
    %187 = vector.load %arg9[%c368, %c0_48] : memref<512x128xbf16, #tpu.memory_space<vmem>>, vector<8x128xbf16>
    tpu.vector_store %arg9[%c368, %c0_48], %186 {strides = array<i32>} : memref<512x128xbf16, #tpu.memory_space<vmem>>, vector<8x128xbf16>,
    %c241_i32 = arith.constant 241 : i32
    %188 = tpu.dynamic_rotate %0 by %c241_i32 dim 1 : vector<8x256xf32>, i32 -> vector<8x256xf32>
    %189 = vector.extract_strided_slice %188 {offsets = [0, 0], sizes = [8, 128], strides = [1, 1]} : vector<8x256xf32> to vector<8x128xf32>
    %190 = arith.truncf %189 : vector<8x128xf32> to vector<8x128xbf16>
    %c376 = arith.constant 376 : index
    %c0_49 = arith.constant 0 : index
    %191 = vector.load %arg9[%c376, %c0_49] : memref<512x128xbf16, #tpu.memory_space<vmem>>, vector<8x128xbf16>
    tpu.vector_store %arg9[%c376, %c0_49], %190 {strides = array<i32>} : memref<512x128xbf16, #tpu.memory_space<vmem>>, vector<8x128xbf16>,
    %c240_i32 = arith.constant 240 : i32
    %192 = tpu.dynamic_rotate %0 by %c240_i32 dim 1 : vector<8x256xf32>, i32 -> vector<8x256xf32>
    %193 = vector.extract_strided_slice %192 {offsets = [0, 0], sizes = [8, 128], strides = [1, 1]} : vector<8x256xf32> to vector<8x128xf32>
    %194 = arith.truncf %193 : vector<8x128xf32> to vector<8x128xbf16>
    %c384 = arith.constant 384 : index
    %c0_50 = arith.constant 0 : index
    %195 = vector.load %arg9[%c384, %c0_50] : memref<512x128xbf16, #tpu.memory_space<vmem>>, vector<8x128xbf16>
    tpu.vector_store %arg9[%c384, %c0_50], %194 {strides = array<i32>} : memref<512x128xbf16, #tpu.memory_space<vmem>>, vector<8x128xbf16>,
    %c239_i32 = arith.constant 239 : i32
    %196 = tpu.dynamic_rotate %0 by %c239_i32 dim 1 : vector<8x256xf32>, i32 -> vector<8x256xf32>
    %197 = vector.extract_strided_slice %196 {offsets = [0, 0], sizes = [8, 128], strides = [1, 1]} : vector<8x256xf32> to vector<8x128xf32>
    %198 = arith.truncf %197 : vector<8x128xf32> to vector<8x128xbf16>
    %c392 = arith.constant 392 : index
    %c0_51 = arith.constant 0 : index
    %199 = vector.load %arg9[%c392, %c0_51] : memref<512x128xbf16, #tpu.memory_space<vmem>>, vector<8x128xbf16>
    tpu.vector_store %arg9[%c392, %c0_51], %198 {strides = array<i32>} : memref<512x128xbf16, #tpu.memory_space<vmem>>, vector<8x128xbf16>,
    %c238_i32 = arith.constant 238 : i32
    %200 = tpu.dynamic_rotate %0 by %c238_i32 dim 1 : vector<8x256xf32>, i32 -> vector<8x256xf32>
    %201 = vector.extract_strided_slice %200 {offsets = [0, 0], sizes = [8, 128], strides = [1, 1]} : vector<8x256xf32> to vector<8x128xf32>
    %202 = arith.truncf %201 : vector<8x128xf32> to vector<8x128xbf16>
    %c400 = arith.constant 400 : index
    %c0_52 = arith.constant 0 : index
    %203 = vector.load %arg9[%c400, %c0_52] : memref<512x128xbf16, #tpu.memory_space<vmem>>, vector<8x128xbf16>
    tpu.vector_store %arg9[%c400, %c0_52], %202 {strides = array<i32>} : memref<512x128xbf16, #tpu.memory_space<vmem>>, vector<8x128xbf16>,
    %c237_i32 = arith.constant 237 : i32
    %204 = tpu.dynamic_rotate %0 by %c237_i32 dim 1 : vector<8x256xf32>, i32 -> vector<8x256xf32>
    %205 = vector.extract_strided_slice %204 {offsets = [0, 0], sizes = [8, 128], strides = [1, 1]} : vector<8x256xf32> to vector<8x128xf32>
    %206 = arith.truncf %205 : vector<8x128xf32> to vector<8x128xbf16>
    %c408 = arith.constant 408 : index
    %c0_53 = arith.constant 0 : index
    %207 = vector.load %arg9[%c408, %c0_53] : memref<512x128xbf16, #tpu.memory_space<vmem>>, vector<8x128xbf16>
    tpu.vector_store %arg9[%c408, %c0_53], %206 {strides = array<i32>} : memref<512x128xbf16, #tpu.memory_space<vmem>>, vector<8x128xbf16>,
    %c236_i32 = arith.constant 236 : i32
    %208 = tpu.dynamic_rotate %0 by %c236_i32 dim 1 : vector<8x256xf32>, i32 -> vector<8x256xf32>
    %209 = vector.extract_strided_slice %208 {offsets = [0, 0], sizes = [8, 128], strides = [1, 1]} : vector<8x256xf32> to vector<8x128xf32>
    %210 = arith.truncf %209 : vector<8x128xf32> to vector<8x128xbf16>
    %c416 = arith.constant 416 : index
    %c0_54 = arith.constant 0 : index
    %211 = vector.load %arg9[%c416, %c0_54] : memref<512x128xbf16, #tpu.memory_space<vmem>>, vector<8x128xbf16>
    tpu.vector_store %arg9[%c416, %c0_54], %210 {strides = array<i32>} : memref<512x128xbf16, #tpu.memory_space<vmem>>, vector<8x128xbf16>,
    %c235_i32 = arith.constant 235 : i32
    %212 = tpu.dynamic_rotate %0 by %c235_i32 dim 1 : vector<8x256xf32>, i32 -> vector<8x256xf32>
    %213 = vector.extract_strided_slice %212 {offsets = [0, 0], sizes = [8, 128], strides = [1, 1]} : vector<8x256xf32> to vector<8x128xf32>
    %214 = arith.truncf %213 : vector<8x128xf32> to vector<8x128xbf16>
    %c424 = arith.constant 424 : index
    %c0_55 = arith.constant 0 : index
    %215 = vector.load %arg9[%c424, %c0_55] : memref<512x128xbf16, #tpu.memory_space<vmem>>, vector<8x128xbf16>
    tpu.vector_store %arg9[%c424, %c0_55], %214 {strides = array<i32>} : memref<512x128xbf16, #tpu.memory_space<vmem>>, vector<8x128xbf16>,
    %c234_i32 = arith.constant 234 : i32
    %216 = tpu.dynamic_rotate %0 by %c234_i32 dim 1 : vector<8x256xf32>, i32 -> vector<8x256xf32>
    %217 = vector.extract_strided_slice %216 {offsets = [0, 0], sizes = [8, 128], strides = [1, 1]} : vector<8x256xf32> to vector<8x128xf32>
    %218 = arith.truncf %217 : vector<8x128xf32> to vector<8x128xbf16>
    %c432 = arith.constant 432 : index
    %c0_56 = arith.constant 0 : index
    %219 = vector.load %arg9[%c432, %c0_56] : memref<512x128xbf16, #tpu.memory_space<vmem>>, vector<8x128xbf16>
    tpu.vector_store %arg9[%c432, %c0_56], %218 {strides = array<i32>} : memref<512x128xbf16, #tpu.memory_space<vmem>>, vector<8x128xbf16>,
    %c233_i32 = arith.constant 233 : i32
    %220 = tpu.dynamic_rotate %0 by %c233_i32 dim 1 : vector<8x256xf32>, i32 -> vector<8x256xf32>
    %221 = vector.extract_strided_slice %220 {offsets = [0, 0], sizes = [8, 128], strides = [1, 1]} : vector<8x256xf32> to vector<8x128xf32>
    %222 = arith.truncf %221 : vector<8x128xf32> to vector<8x128xbf16>
    %c440 = arith.constant 440 : index
    %c0_57 = arith.constant 0 : index
    %223 = vector.load %arg9[%c440, %c0_57] : memref<512x128xbf16, #tpu.memory_space<vmem>>, vector<8x128xbf16>
    tpu.vector_store %arg9[%c440, %c0_57], %222 {strides = array<i32>} : memref<512x128xbf16, #tpu.memory_space<vmem>>, vector<8x128xbf16>,
    %c232_i32 = arith.constant 232 : i32
    %224 = tpu.dynamic_rotate %0 by %c232_i32 dim 1 : vector<8x256xf32>, i32 -> vector<8x256xf32>
    %225 = vector.extract_strided_slice %224 {offsets = [0, 0], sizes = [8, 128], strides = [1, 1]} : vector<8x256xf32> to vector<8x128xf32>
    %226 = arith.truncf %225 : vector<8x128xf32> to vector<8x128xbf16>
    %c448 = arith.constant 448 : index
    %c0_58 = arith.constant 0 : index
    %227 = vector.load %arg9[%c448, %c0_58] : memref<512x128xbf16, #tpu.memory_space<vmem>>, vector<8x128xbf16>
    tpu.vector_store %arg9[%c448, %c0_58], %226 {strides = array<i32>} : memref<512x128xbf16, #tpu.memory_space<vmem>>, vector<8x128xbf16>,
    %c231_i32 = arith.constant 231 : i32
    %228 = tpu.dynamic_rotate %0 by %c231_i32 dim 1 : vector<8x256xf32>, i32 -> vector<8x256xf32>
    %229 = vector.extract_strided_slice %228 {offsets = [0, 0], sizes = [8, 128], strides = [1, 1]} : vector<8x256xf32> to vector<8x128xf32>
    %230 = arith.truncf %229 : vector<8x128xf32> to vector<8x128xbf16>
    %c456 = arith.constant 456 : index
    %c0_59 = arith.constant 0 : index
    %231 = vector.load %arg9[%c456, %c0_59] : memref<512x128xbf16, #tpu.memory_space<vmem>>, vector<8x128xbf16>
    tpu.vector_store %arg9[%c456, %c0_59], %230 {strides = array<i32>} : memref<512x128xbf16, #tpu.memory_space<vmem>>, vector<8x128xbf16>,
    %c230_i32 = arith.constant 230 : i32
    %232 = tpu.dynamic_rotate %0 by %c230_i32 dim 1 : vector<8x256xf32>, i32 -> vector<8x256xf32>
    %233 = vector.extract_strided_slice %232 {offsets = [0, 0], sizes = [8, 128], strides = [1, 1]} : vector<8x256xf32> to vector<8x128xf32>
    %234 = arith.truncf %233 : vector<8x128xf32> to vector<8x128xbf16>
    %c464 = arith.constant 464 : index
    %c0_60 = arith.constant 0 : index
    %235 = vector.load %arg9[%c464, %c0_60] : memref<512x128xbf16, #tpu.memory_space<vmem>>, vector<8x128xbf16>
    tpu.vector_store %arg9[%c464, %c0_60], %234 {strides = array<i32>} : memref<512x128xbf16, #tpu.memory_space<vmem>>, vector<8x128xbf16>,
    %c229_i32 = arith.constant 229 : i32
    %236 = tpu.dynamic_rotate %0 by %c229_i32 dim 1 : vector<8x256xf32>, i32 -> vector<8x256xf32>
    %237 = vector.extract_strided_slice %236 {offsets = [0, 0], sizes = [8, 128], strides = [1, 1]} : vector<8x256xf32> to vector<8x128xf32>
    %238 = arith.truncf %237 : vector<8x128xf32> to vector<8x128xbf16>
    %c472 = arith.constant 472 : index
    %c0_61 = arith.constant 0 : index
    %239 = vector.load %arg9[%c472, %c0_61] : memref<512x128xbf16, #tpu.memory_space<vmem>>, vector<8x128xbf16>
    tpu.vector_store %arg9[%c472, %c0_61], %238 {strides = array<i32>} : memref<512x128xbf16, #tpu.memory_space<vmem>>, vector<8x128xbf16>,
    %c228_i32 = arith.constant 228 : i32
    %240 = tpu.dynamic_rotate %0 by %c228_i32 dim 1 : vector<8x256xf32>, i32 -> vector<8x256xf32>
    %241 = vector.extract_strided_slice %240 {offsets = [0, 0], sizes = [8, 128], strides = [1, 1]} : vector<8x256xf32> to vector<8x128xf32>
    %242 = arith.truncf %241 : vector<8x128xf32> to vector<8x128xbf16>
    %c480 = arith.constant 480 : index
    %c0_62 = arith.constant 0 : index
    %243 = vector.load %arg9[%c480, %c0_62] : memref<512x128xbf16, #tpu.memory_space<vmem>>, vector<8x128xbf16>
    tpu.vector_store %arg9[%c480, %c0_62], %242 {strides = array<i32>} : memref<512x128xbf16, #tpu.memory_space<vmem>>, vector<8x128xbf16>,
    %c227_i32 = arith.constant 227 : i32
    %244 = tpu.dynamic_rotate %0 by %c227_i32 dim 1 : vector<8x256xf32>, i32 -> vector<8x256xf32>
    %245 = vector.extract_strided_slice %244 {offsets = [0, 0], sizes = [8, 128], strides = [1, 1]} : vector<8x256xf32> to vector<8x128xf32>
    %246 = arith.truncf %245 : vector<8x128xf32> to vector<8x128xbf16>
    %c488 = arith.constant 488 : index
    %c0_63 = arith.constant 0 : index
    %247 = vector.load %arg9[%c488, %c0_63] : memref<512x128xbf16, #tpu.memory_space<vmem>>, vector<8x128xbf16>
    tpu.vector_store %arg9[%c488, %c0_63], %246 {strides = array<i32>} : memref<512x128xbf16, #tpu.memory_space<vmem>>, vector<8x128xbf16>,
    %c226_i32 = arith.constant 226 : i32
    %248 = tpu.dynamic_rotate %0 by %c226_i32 dim 1 : vector<8x256xf32>, i32 -> vector<8x256xf32>
    %249 = vector.extract_strided_slice %248 {offsets = [0, 0], sizes = [8, 128], strides = [1, 1]} : vector<8x256xf32> to vector<8x128xf32>
    %250 = arith.truncf %249 : vector<8x128xf32> to vector<8x128xbf16>
    %c496 = arith.constant 496 : index
    %c0_64 = arith.constant 0 : index
    %251 = vector.load %arg9[%c496, %c0_64] : memref<512x128xbf16, #tpu.memory_space<vmem>>, vector<8x128xbf16>
    tpu.vector_store %arg9[%c496, %c0_64], %250 {strides = array<i32>} : memref<512x128xbf16, #tpu.memory_space<vmem>>, vector<8x128xbf16>,
    %c225_i32 = arith.constant 225 : i32
    %252 = tpu.dynamic_rotate %0 by %c225_i32 dim 1 : vector<8x256xf32>, i32 -> vector<8x256xf32>
    %253 = vector.extract_strided_slice %252 {offsets = [0, 0], sizes = [8, 128], strides = [1, 1]} : vector<8x256xf32> to vector<8x128xf32>
    %254 = arith.truncf %253 : vector<8x128xf32> to vector<8x128xbf16>
    %c504 = arith.constant 504 : index
    %c0_65 = arith.constant 0 : index
    %255 = vector.load %arg9[%c504, %c0_65] : memref<512x128xbf16, #tpu.memory_space<vmem>>, vector<8x128xbf16>
    tpu.vector_store %arg9[%c504, %c0_65], %254 {strides = array<i32>} : memref<512x128xbf16, #tpu.memory_space<vmem>>, vector<8x128xbf16>,
    %c0_66 = arith.constant 0 : index
    %c0_67 = arith.constant 0 : index
    %256 = vector.load %arg1[%c0_66, %c0_67] : memref<32x512xbf16, #tpu.memory_space<vmem>>, vector<32x512xbf16>
    %c0_68 = arith.constant 0 : index
    %c0_69 = arith.constant 0 : index
    %257 = vector.load %arg9[%c0_68, %c0_69] : memref<512x128xbf16, #tpu.memory_space<vmem>>, vector<512x128xbf16>
    %cst = arith.constant dense<0.000000e+00> : vector<32x128xf32>
    %258 = tpu.matmul %256, %257, %cst {dimension_numbers = #tpu.dot_dimension_numbers<[1], [0], [0], [1], [0, 0, 1, 1], [], []>} : vector<32x512xbf16>, vector<512x128xbf16>, vector<32x128xf32> -> vector<32x128xf32>
    %c0_70 = arith.constant 0 : index
    %c0_71 = arith.constant 0 : index
    %259 = vector.load %arg5[%c0_70, %c0_71] : memref<32x2xf32, #tpu.memory_space<vmem>>, vector<32x1xf32>
    %260 = vector.broadcast %259 : vector<32x1xf32> to vector<32x128xf32>
    %261 = arith.addf %258, %260 : vector<32x128xf32>
    %cst_72 = arith.constant 0.000000e+00 : f32
    %262 = vector.broadcast %cst_72 : f32 to vector<32x128xf32>
    %263 = arith.cmpf ogt, %261, %262 : vector<32x128xf32>
    %cst_73 = arith.constant 0.000000e+00 : f32
    %264 = vector.broadcast %cst_73 : f32 to vector<32x128xf32>
    %265 = arith.minimumf %261, %264 : vector<32x128xf32>
    %266 = math.exp %265 : vector<32x128xf32>
    %cst_74 = arith.constant 1.000000e+00 : f32
    %267 = vector.broadcast %cst_74 : f32 to vector<32x128xf32>
    %268 = arith.subf %266, %267 : vector<32x128xf32>
    %269 = arith.select %263, %261, %268 : vector<32x128xi1>, vector<32x128xf32>
    %c0_75 = arith.constant 0 : index
    %c0_76 = arith.constant 0 : index
    %270 = vector.load %arg2[%c0_75, %c0_76] : memref<128x128xf32, #tpu.memory_space<vmem>>, vector<128x128xf32>
    %cst_77 = arith.constant dense<0.000000e+00> : vector<32x128xf32>
    %271 = tpu.matmul %269, %270, %cst_77 {dimension_numbers = #tpu.dot_dimension_numbers<[1], [0], [0], [1], [0, 0, 1, 1], [], []>} : vector<32x128xf32>, vector<128x128xf32>, vector<32x128xf32> -> vector<32x128xf32>
    %272 = arith.truncf %271 : vector<32x128xf32> to vector<32x128xbf16>
    %c0_78 = arith.constant 0 : index
    %c0_79 = arith.constant 0 : index
    %273 = vector.load %arg10[%c0_78, %c0_79] : memref<512x128xbf16, #tpu.memory_space<vmem>>, vector<32x128xbf16>
    tpu.vector_store %arg10[%c0_78, %c0_79], %272 {strides = array<i32>} : memref<512x128xbf16, #tpu.memory_space<vmem>>, vector<32x128xbf16>,
    %c127_i32 = arith.constant 127 : i32
    %274 = tpu.dynamic_rotate %271 by %c127_i32 dim 1 : vector<32x128xf32>, i32 -> vector<32x128xf32>
    %275 = arith.truncf %274 : vector<32x128xf32> to vector<32x128xbf16>
    %c32_80 = arith.constant 32 : index
    %c0_81 = arith.constant 0 : index
    %276 = vector.load %arg10[%c32_80, %c0_81] : memref<512x128xbf16, #tpu.memory_space<vmem>>, vector<32x128xbf16>
    tpu.vector_store %arg10[%c32_80, %c0_81], %275 {strides = array<i32>} : memref<512x128xbf16, #tpu.memory_space<vmem>>, vector<32x128xbf16>,
    %c126_i32 = arith.constant 126 : i32
    %277 = tpu.dynamic_rotate %271 by %c126_i32 dim 1 : vector<32x128xf32>, i32 -> vector<32x128xf32>
    %278 = arith.truncf %277 : vector<32x128xf32> to vector<32x128xbf16>
    %c64_82 = arith.constant 64 : index
    %c0_83 = arith.constant 0 : index
    %279 = vector.load %arg10[%c64_82, %c0_83] : memref<512x128xbf16, #tpu.memory_space<vmem>>, vector<32x128xbf16>
    tpu.vector_store %arg10[%c64_82, %c0_83], %278 {strides = array<i32>} : memref<512x128xbf16, #tpu.memory_space<vmem>>, vector<32x128xbf16>,
    %c125_i32 = arith.constant 125 : i32
    %280 = tpu.dynamic_rotate %271 by %c125_i32 dim 1 : vector<32x128xf32>, i32 -> vector<32x128xf32>
    %281 = arith.truncf %280 : vector<32x128xf32> to vector<32x128xbf16>
    %c96_84 = arith.constant 96 : index
    %c0_85 = arith.constant 0 : index
    %282 = vector.load %arg10[%c96_84, %c0_85] : memref<512x128xbf16, #tpu.memory_space<vmem>>, vector<32x128xbf16>
    tpu.vector_store %arg10[%c96_84, %c0_85], %281 {strides = array<i32>} : memref<512x128xbf16, #tpu.memory_space<vmem>>, vector<32x128xbf16>,
    %c124_i32 = arith.constant 124 : i32
    %283 = tpu.dynamic_rotate %271 by %c124_i32 dim 1 : vector<32x128xf32>, i32 -> vector<32x128xf32>
    %284 = arith.truncf %283 : vector<32x128xf32> to vector<32x128xbf16>
    %c128_86 = arith.constant 128 : index
    %c0_87 = arith.constant 0 : index
    %285 = vector.load %arg10[%c128_86, %c0_87] : memref<512x128xbf16, #tpu.memory_space<vmem>>, vector<32x128xbf16>
    tpu.vector_store %arg10[%c128_86, %c0_87], %284 {strides = array<i32>} : memref<512x128xbf16, #tpu.memory_space<vmem>>, vector<32x128xbf16>,
    %c123_i32 = arith.constant 123 : i32
    %286 = tpu.dynamic_rotate %271 by %c123_i32 dim 1 : vector<32x128xf32>, i32 -> vector<32x128xf32>
    %287 = arith.truncf %286 : vector<32x128xf32> to vector<32x128xbf16>
    %c160_88 = arith.constant 160 : index
    %c0_89 = arith.constant 0 : index
    %288 = vector.load %arg10[%c160_88, %c0_89] : memref<512x128xbf16, #tpu.memory_space<vmem>>, vector<32x128xbf16>
    tpu.vector_store %arg10[%c160_88, %c0_89], %287 {strides = array<i32>} : memref<512x128xbf16, #tpu.memory_space<vmem>>, vector<32x128xbf16>,
    %c122_i32 = arith.constant 122 : i32
    %289 = tpu.dynamic_rotate %271 by %c122_i32 dim 1 : vector<32x128xf32>, i32 -> vector<32x128xf32>
    %290 = arith.truncf %289 : vector<32x128xf32> to vector<32x128xbf16>
    %c192_90 = arith.constant 192 : index
    %c0_91 = arith.constant 0 : index
    %291 = vector.load %arg10[%c192_90, %c0_91] : memref<512x128xbf16, #tpu.memory_space<vmem>>, vector<32x128xbf16>
    tpu.vector_store %arg10[%c192_90, %c0_91], %290 {strides = array<i32>} : memref<512x128xbf16, #tpu.memory_space<vmem>>, vector<32x128xbf16>,
    %c121_i32 = arith.constant 121 : i32
    %292 = tpu.dynamic_rotate %271 by %c121_i32 dim 1 : vector<32x128xf32>, i32 -> vector<32x128xf32>
    %293 = arith.truncf %292 : vector<32x128xf32> to vector<32x128xbf16>
    %c224_92 = arith.constant 224 : index
    %c0_93 = arith.constant 0 : index
    %294 = vector.load %arg10[%c224_92, %c0_93] : memref<512x128xbf16, #tpu.memory_space<vmem>>, vector<32x128xbf16>
    tpu.vector_store %arg10[%c224_92, %c0_93], %293 {strides = array<i32>} : memref<512x128xbf16, #tpu.memory_space<vmem>>, vector<32x128xbf16>,
    %c120_i32 = arith.constant 120 : i32
    %295 = tpu.dynamic_rotate %271 by %c120_i32 dim 1 : vector<32x128xf32>, i32 -> vector<32x128xf32>
    %296 = arith.truncf %295 : vector<32x128xf32> to vector<32x128xbf16>
    %c256_94 = arith.constant 256 : index
    %c0_95 = arith.constant 0 : index
    %297 = vector.load %arg10[%c256_94, %c0_95] : memref<512x128xbf16, #tpu.memory_space<vmem>>, vector<32x128xbf16>
    tpu.vector_store %arg10[%c256_94, %c0_95], %296 {strides = array<i32>} : memref<512x128xbf16, #tpu.memory_space<vmem>>, vector<32x128xbf16>,
    %c119_i32 = arith.constant 119 : i32
    %298 = tpu.dynamic_rotate %271 by %c119_i32 dim 1 : vector<32x128xf32>, i32 -> vector<32x128xf32>
    %299 = arith.truncf %298 : vector<32x128xf32> to vector<32x128xbf16>
    %c288_96 = arith.constant 288 : index
    %c0_97 = arith.constant 0 : index
    %300 = vector.load %arg10[%c288_96, %c0_97] : memref<512x128xbf16, #tpu.memory_space<vmem>>, vector<32x128xbf16>
    tpu.vector_store %arg10[%c288_96, %c0_97], %299 {strides = array<i32>} : memref<512x128xbf16, #tpu.memory_space<vmem>>, vector<32x128xbf16>,
    %c118_i32 = arith.constant 118 : i32
    %301 = tpu.dynamic_rotate %271 by %c118_i32 dim 1 : vector<32x128xf32>, i32 -> vector<32x128xf32>
    %302 = arith.truncf %301 : vector<32x128xf32> to vector<32x128xbf16>
    %c320_98 = arith.constant 320 : index
    %c0_99 = arith.constant 0 : index
    %303 = vector.load %arg10[%c320_98, %c0_99] : memref<512x128xbf16, #tpu.memory_space<vmem>>, vector<32x128xbf16>
    tpu.vector_store %arg10[%c320_98, %c0_99], %302 {strides = array<i32>} : memref<512x128xbf16, #tpu.memory_space<vmem>>, vector<32x128xbf16>,
    %c117_i32 = arith.constant 117 : i32
    %304 = tpu.dynamic_rotate %271 by %c117_i32 dim 1 : vector<32x128xf32>, i32 -> vector<32x128xf32>
    %305 = arith.truncf %304 : vector<32x128xf32> to vector<32x128xbf16>
    %c352_100 = arith.constant 352 : index
    %c0_101 = arith.constant 0 : index
    %306 = vector.load %arg10[%c352_100, %c0_101] : memref<512x128xbf16, #tpu.memory_space<vmem>>, vector<32x128xbf16>
    tpu.vector_store %arg10[%c352_100, %c0_101], %305 {strides = array<i32>} : memref<512x128xbf16, #tpu.memory_space<vmem>>, vector<32x128xbf16>,
    %c116_i32 = arith.constant 116 : i32
    %307 = tpu.dynamic_rotate %271 by %c116_i32 dim 1 : vector<32x128xf32>, i32 -> vector<32x128xf32>
    %308 = arith.truncf %307 : vector<32x128xf32> to vector<32x128xbf16>
    %c384_102 = arith.constant 384 : index
    %c0_103 = arith.constant 0 : index
    %309 = vector.load %arg10[%c384_102, %c0_103] : memref<512x128xbf16, #tpu.memory_space<vmem>>, vector<32x128xbf16>
    tpu.vector_store %arg10[%c384_102, %c0_103], %308 {strides = array<i32>} : memref<512x128xbf16, #tpu.memory_space<vmem>>, vector<32x128xbf16>,
    %c115_i32 = arith.constant 115 : i32
    %310 = tpu.dynamic_rotate %271 by %c115_i32 dim 1 : vector<32x128xf32>, i32 -> vector<32x128xf32>
    %311 = arith.truncf %310 : vector<32x128xf32> to vector<32x128xbf16>
    %c416_104 = arith.constant 416 : index
    %c0_105 = arith.constant 0 : index
    %312 = vector.load %arg10[%c416_104, %c0_105] : memref<512x128xbf16, #tpu.memory_space<vmem>>, vector<32x128xbf16>
    tpu.vector_store %arg10[%c416_104, %c0_105], %311 {strides = array<i32>} : memref<512x128xbf16, #tpu.memory_space<vmem>>, vector<32x128xbf16>,
    %c114_i32 = arith.constant 114 : i32
    %313 = tpu.dynamic_rotate %271 by %c114_i32 dim 1 : vector<32x128xf32>, i32 -> vector<32x128xf32>
    %314 = arith.truncf %313 : vector<32x128xf32> to vector<32x128xbf16>
    %c448_106 = arith.constant 448 : index
    %c0_107 = arith.constant 0 : index
    %315 = vector.load %arg10[%c448_106, %c0_107] : memref<512x128xbf16, #tpu.memory_space<vmem>>, vector<32x128xbf16>
    tpu.vector_store %arg10[%c448_106, %c0_107], %314 {strides = array<i32>} : memref<512x128xbf16, #tpu.memory_space<vmem>>, vector<32x128xbf16>,
    %c113_i32 = arith.constant 113 : i32
    %316 = tpu.dynamic_rotate %271 by %c113_i32 dim 1 : vector<32x128xf32>, i32 -> vector<32x128xf32>
    %317 = arith.truncf %316 : vector<32x128xf32> to vector<32x128xbf16>
    %c480_108 = arith.constant 480 : index
    %c0_109 = arith.constant 0 : index
    %318 = vector.load %arg10[%c480_108, %c0_109] : memref<512x128xbf16, #tpu.memory_space<vmem>>, vector<32x128xbf16>
    tpu.vector_store %arg10[%c480_108, %c0_109], %317 {strides = array<i32>} : memref<512x128xbf16, #tpu.memory_space<vmem>>, vector<32x128xbf16>,
    %c0_110 = arith.constant 0 : index
    %c0_111 = arith.constant 0 : index
    %319 = vector.load %arg3[%c0_110, %c0_111] : memref<32x512xbf16, #tpu.memory_space<vmem>>, vector<32x512xbf16>
    %c0_112 = arith.constant 0 : index
    %c0_113 = arith.constant 0 : index
    %320 = vector.load %arg10[%c0_112, %c0_113] : memref<512x128xbf16, #tpu.memory_space<vmem>>, vector<512x128xbf16>
    %cst_114 = arith.constant dense<0.000000e+00> : vector<32x128xf32>
    %321 = tpu.matmul %319, %320, %cst_114 {dimension_numbers = #tpu.dot_dimension_numbers<[1], [0], [0], [1], [0, 0, 1, 1], [], []>} : vector<32x512xbf16>, vector<512x128xbf16>, vector<32x128xf32> -> vector<32x128xf32>
    %c0_115 = arith.constant 0 : index
    %c1 = arith.constant 1 : index
    %322 = vector.load %arg5[%c0_115, %c1] : memref<32x2xf32, #tpu.memory_space<vmem>>, vector<32x1xf32>
    %323 = vector.broadcast %322 : vector<32x1xf32> to vector<32x128xf32>
    %324 = arith.addf %321, %323 : vector<32x128xf32>
    %cst_116 = arith.constant 0.000000e+00 : f32
    %325 = vector.broadcast %cst_116 : f32 to vector<32x128xf32>
    %326 = arith.cmpf ogt, %324, %325 : vector<32x128xf32>
    %cst_117 = arith.constant 0.000000e+00 : f32
    %327 = vector.broadcast %cst_117 : f32 to vector<32x128xf32>
    %328 = arith.minimumf %324, %327 : vector<32x128xf32>
    %329 = math.exp %328 : vector<32x128xf32>
    %cst_118 = arith.constant 1.000000e+00 : f32
    %330 = vector.broadcast %cst_118 : f32 to vector<32x128xf32>
    %331 = arith.subf %329, %330 : vector<32x128xf32>
    %332 = arith.select %326, %324, %331 : vector<32x128xi1>, vector<32x128xf32>
    %c0_119 = arith.constant 0 : index
    %c0_120 = arith.constant 0 : index
    %333 = vector.load %arg4[%c0_119, %c0_120] : memref<160x48xf32, #tpu.memory_space<vmem>>, vector<128x48xf32>
    %c128_121 = arith.constant 128 : index
    %c0_122 = arith.constant 0 : index
    %334 = vector.load %arg4[%c128_121, %c0_122] : memref<160x48xf32, #tpu.memory_space<vmem>>, vector<32x48xf32>
    %cst_123 = arith.constant dense<0.000000e+00> : vector<32x48xf32>
    %335 = tpu.matmul %332, %333, %cst_123 {dimension_numbers = #tpu.dot_dimension_numbers<[1], [0], [0], [1], [0, 0, 1, 1], [], []>} : vector<32x128xf32>, vector<128x48xf32>, vector<32x48xf32> -> vector<32x48xf32>
    %336 = arith.mulf %335, %334 : vector<32x48xf32>
    %c0_124 = arith.constant 0 : index
    %c0_125 = arith.constant 0 : index
    %337 = vector.load %arg6[%c0_124, %c0_125] : memref<49x3xf32, #tpu.memory_space<vmem>>, vector<48x3xf32>
    %cst_126 = arith.constant dense<0.000000e+00> : vector<32x3xf32>
    %338 = tpu.matmul %336, %337, %cst_126 {dimension_numbers = #tpu.dot_dimension_numbers<[1], [0], [0], [1], [0, 0, 1, 1], [], []>} : vector<32x48xf32>, vector<48x3xf32>, vector<32x3xf32> -> vector<32x3xf32>
    %c0_127 = arith.constant 0 : index
    %c0_128 = arith.constant 0 : index
    %339 = vector.load %arg7[%c0_127, %c0_128] : memref<2x32xf32, #tpu.memory_space<vmem>>, vector<2x32xf32>
    %cst_129 = arith.constant dense<0.000000e+00> : vector<2x3xf32>
    %340 = tpu.matmul %339, %338, %cst_129 {dimension_numbers = #tpu.dot_dimension_numbers<[1], [0], [0], [1], [0, 0, 1, 1], [], []>} : vector<2x32xf32>, vector<32x3xf32>, vector<2x3xf32> -> vector<2x3xf32>
    %c48_130 = arith.constant 48 : index
    %c0_131 = arith.constant 0 : index
    %341 = vector.load %arg6[%c48_130, %c0_131] : memref<49x3xf32, #tpu.memory_space<vmem>>, vector<1x3xf32>
    %342 = vector.broadcast %341 : vector<1x3xf32> to vector<2x3xf32>
    %343 = arith.addf %340, %342 : vector<2x3xf32>
    %c0_132 = arith.constant 0 : index
    %c0_133 = arith.constant 0 : index
    %344 = vector.load %arg8[%c0_132, %c0_133] : memref<2x3xf32, #tpu.memory_space<vmem>>, vector<2x3xf32>
    tpu.vector_store %arg8[%c0_132, %c0_133], %343 {strides = array<i32>} : memref<2x3xf32, #tpu.memory_space<vmem>>, vector<2x3xf32>,
    return
  }
}

</mosaic_0001>

<llo_original>
// kernel: cnn_forward.1
$region0: #{cnn_forward.1}
  #allocation0 [shape = 'u32[]', space=smem, size = 0x4, offset = 0x4, fixed_abs, tag = 'smem constant byte address 0x4 - core index']
  #allocation1 [shape = 'u32[72,128]{1,0:T(1,128)}', space=vmem, size = 0x9000, scoped, tag = 'internal scratch']
  #allocation2 [shape = 'bf16[512,128]{1,0:T(8,128)(2,1)}', space=vmem, size = 0x20000, scoped, tag = 'scratch operand']
  #allocation3 [shape = 'bf16[512,128]{1,0:T(8,128)(2,1)}', space=vmem, size = 0x20000, scoped, tag = 'scratch operand']
  %s0 = inlined_call_operand.vmem [shape: f32[8,256], index: 0, kind: input, shape index: {}]
  %s1 = inlined_call_operand.vmem [shape: bf16[32,512], index: 1, kind: input, shape index: {}]
  %s2 = inlined_call_operand.vmem [shape: f32[128,128], index: 2, kind: input, shape index: {}]
  %s3 = inlined_call_operand.vmem [shape: bf16[32,512], index: 3, kind: input, shape index: {}]
  %s4 = inlined_call_operand.vmem [shape: f32[160,48], index: 4, kind: input, shape index: {}]
  %s5 = inlined_call_operand.vmem [shape: f32[32,2], index: 5, kind: input, shape index: {}]
  %s6 = inlined_call_operand.vmem [shape: f32[49,3], index: 6, kind: input, shape index: {}]
  %s7 = inlined_call_operand.vmem [shape: f32[2,32], index: 7, kind: input, shape index: {}]
  %s8 = inlined_call_operand.hbm [shape: f32[2,3], index: 8, kind: output, shape index: {}]
  %s9 = sld [smem:[#allocation0]]
  $region42: #{cnn_forward.1} parent=0
    _
  %s11 = ssub.s32 1, %s9
  %s12 = scalar_select 0, %s11, %s9
  $region1: #{cnn_forward.1} parent=0
    #allocation4 [shape = 'u8[1024]{0}', space=vmem, size = 0x400, scoped, tag = 'output window, operand 0, single buffered']
    #allocation5 [shape = 's32[1]{0}', space=sflag, size = 0x4, scoped, tag = 'scoped memory for cnn_forward.1']
    %13 = vsyncpa [#allocation5], 0
    // Predicated region
    $region2: #{cnn_forward.1} parent=1 // pred_check
      _
    $region3: #{cnn_forward.1} parent=1 // pred_check_branch
      %15 = sbr.rel (0) target = $region5
    $region4: #{cnn_forward.1} parent=1 // pred_region
      _
    $region5: #{cnn_forward.1} parent=1 // pred_fallthru
      _
    // Predicated region
    $region6: #{cnn_forward.1} parent=1 // pred_check
      _
    $region7: #{cnn_forward.1} parent=1 // pred_check_branch
      %17 = sbr.rel (0) target = $region9
    $region8: #{cnn_forward.1} parent=1 // pred_region
      _
    $region9: #{cnn_forward.1} parent=1 // pred_fallthru
      _
    // Predicated region
    $region10: #{cnn_forward.1} parent=1 // pred_check
      _
    $region11: #{cnn_forward.1} parent=1 // pred_check_branch
      %19 = sbr.rel (0) target = $region13
    $region12: #{cnn_forward.1} parent=1 // pred_region
      _
    $region13: #{cnn_forward.1} parent=1 // pred_fallthru
      _
    // Predicated region
    $region14: #{cnn_forward.1} parent=1 // pred_check
      _
    $region15: #{cnn_forward.1} parent=1 // pred_check_branch
      %21 = sbr.rel (0) target = $region17
    $region16: #{cnn_forward.1} parent=1 // pred_region
      _
    $region17: #{cnn_forward.1} parent=1 // pred_fallthru
      _
    // Predicated region
    $region18: #{cnn_forward.1} parent=1 // pred_check
      _
    $region19: #{cnn_forward.1} parent=1 // pred_check_branch
      %23 = sbr.rel (0) target = $region21
    $region20: #{cnn_forward.1} parent=1 // pred_region
      _
    $region21: #{cnn_forward.1} parent=1 // pred_fallthru
      _
    // Predicated region
    $region22: #{cnn_forward.1} parent=1 // pred_check
      _
    $region23: #{cnn_forward.1} parent=1 // pred_check_branch
      %25 = sbr.rel (0) target = $region25
    $region24: #{cnn_forward.1} parent=1 // pred_region
      _
    $region25: #{cnn_forward.1} parent=1 // pred_fallthru
      _
    // Predicated region
    $region26: #{cnn_forward.1} parent=1 // pred_check
      _
    $region27: #{cnn_forward.1} parent=1 // pred_check_branch
      %27 = sbr.rel (0) target = $region29
    $region28: #{cnn_forward.1} parent=1 // pred_region
      _
    $region29: #{cnn_forward.1} parent=1 // pred_fallthru
      _
    // Predicated region
    $region30: #{cnn_forward.1} parent=1 // pred_check
      _
    $region31: #{cnn_forward.1} parent=1 // pred_check_branch
      %29 = sbr.rel (0) target = $region33
    $region32: #{cnn_forward.1} parent=1 // pred_region
      _
    $region33: #{cnn_forward.1} parent=1 // pred_fallthru
      _
    %v30 = vld [vmem:[%s0] sm:$0xff]
    %v31 = vld [vmem:[%s0 + $0x8] sm:$0xff]
    %32 = vrot.lane.b32.xlu0 %v30, 32
    %v33 = vpop.permute.xlu0 %32
    %34 = vrot.lane.b32.xlu0 %v31, 32
    %v35 = vpop.permute.xlu0 %34
    %v36 = vlaneseq
    %v37 = vand.u32 %v36, 127
    %vm38 = vcmp.lt.s32.totalorder %v37, 32
    %v39 = vsel %vm38, %v35, %v33
    %v40 = vpack.c.bf16 %v39, %v39
    %41 = vst [vmem:[#allocation2] sm:$0xf] %v40
    %42 = vrot.lane.b32.xlu0 %v30, 31
    %v43 = vpop.permute.xlu0 %42
    %44 = vrot.lane.b32.xlu0 %v31, 31
    %v45 = vpop.permute.xlu0 %44
    %vm46 = vcmp.lt.s32.totalorder %v37, 31
    %v47 = vsel %vm46, %v45, %v43
    %v48 = vpack.c.bf16 %v47, %v47
    %49 = vst [vmem:[#allocation2 + $0x4] sm:$0xf] %v48
    %50 = vrot.lane.b32.xlu0 %v30, 30
    %v51 = vpop.permute.xlu0 %50
    %52 = vrot.lane.b32.xlu0 %v31, 30
    %v53 = vpop.permute.xlu0 %52
    %vm54 = vcmp.lt.s32.totalorder %v37, 30
    %v55 = vsel %vm54, %v53, %v51
    %v56 = vpack.c.bf16 %v55, %v55
    %57 = vst [vmem:[#allocation2 + $0x8] sm:$0xf] %v56
    %58 = vrot.lane.b32.xlu0 %v30, 29
    %v59 = vpop.permute.xlu0 %58
    %60 = vrot.lane.b32.xlu0 %v31, 29
    %v61 = vpop.permute.xlu0 %60
    %vm62 = vcmp.lt.s32.totalorder %v37, 29
    %v63 = vsel %vm62, %v61, %v59
    %v64 = vpack.c.bf16 %v63, %v63
    %65 = vst [vmem:[#allocation2 + $0xc] sm:$0xf] %v64
    %66 = vrot.lane.b32.xlu0 %v30, 28
    %v67 = vpop.permute.xlu0 %66
    %68 = vrot.lane.b32.xlu0 %v31, 28
    %v69 = vpop.permute.xlu0 %68
    %vm70 = vcmp.lt.s32.totalorder %v37, 28
    %v71 = vsel %vm70, %v69, %v67
    %v72 = vpack.c.bf16 %v71, %v71
    %73 = vst [vmem:[#allocation2 + $0x10] sm:$0xf] %v72
    %74 = vrot.lane.b32.xlu0 %v30, 27
    %v75 = vpop.permute.xlu0 %74
    %76 = vrot.lane.b32.xlu0 %v31, 27
    %v77 = vpop.permute.xlu0 %76
    %vm78 = vcmp.lt.s32.totalorder %v37, 27
    %v79 = vsel %vm78, %v77, %v75
    %v80 = vpack.c.bf16 %v79, %v79
    %81 = vst [vmem:[#allocation2 + $0x14] sm:$0xf] %v80
    %82 = vrot.lane.b32.xlu0 %v30, 26
    %v83 = vpop.permute.xlu0 %82
    %84 = vrot.lane.b32.xlu0 %v31, 26
    %v85 = vpop.permute.xlu0 %84
    %vm86 = vcmp.lt.s32.totalorder %v37, 26
    %v87 = vsel %vm86, %v85, %v83
    %v88 = vpack.c.bf16 %v87, %v87
    %89 = vst [vmem:[#allocation2 + $0x18] sm:$0xf] %v88
    %90 = vrot.lane.b32.xlu0 %v30, 25
    %v91 = vpop.permute.xlu0 %90
    %92 = vrot.lane.b32.xlu0 %v31, 25
    %v93 = vpop.permute.xlu0 %92
    %vm94 = vcmp.lt.s32.totalorder %v37, 25
    %v95 = vsel %vm94, %v93, %v91
    %v96 = vpack.c.bf16 %v95, %v95
    %97 = vst [vmem:[#allocation2 + $0x1c] sm:$0xf] %v96
    %98 = vrot.lane.b32.xlu0 %v30, 24
    %v99 = vpop.permute.xlu0 %98
    %100 = vrot.lane.b32.xlu0 %v31, 24
    %v101 = vpop.permute.xlu0 %100
    %vm102 = vcmp.lt.s32.totalorder %v37, 24
    %v103 = vsel %vm102, %v101, %v99
    %v104 = vpack.c.bf16 %v103, %v103
    %105 = vst [vmem:[#allocation2 + $0x20] sm:$0xf] %v104
    %106 = vrot.lane.b32.xlu0 %v30, 23
    %v107 = vpop.permute.xlu0 %106
    %108 = vrot.lane.b32.xlu0 %v31, 23
    %v109 = vpop.permute.xlu0 %108
    %vm110 = vcmp.lt.s32.totalorder %v37, 23
    %v111 = vsel %vm110, %v109, %v107
    %v112 = vpack.c.bf16 %v111, %v111
    %113 = vst [vmem:[#allocation2 + $0x24] sm:$0xf] %v112
    %114 = vrot.lane.b32.xlu0 %v30, 22
    %v115 = vpop.permute.xlu0 %114
    %116 = vrot.lane.b32.xlu0 %v31, 22
    %v117 = vpop.permute.xlu0 %116
    %vm118 = vcmp.lt.s32.totalorder %v37, 22
    %v119 = vsel %vm118, %v117, %v115
    %v120 = vpack.c.bf16 %v119, %v119
    %121 = vst [vmem:[#allocation2 + $0x28] sm:$0xf] %v120
    %122 = vrot.lane.b32.xlu0 %v30, 21
    %v123 = vpop.permute.xlu0 %122
    %124 = vrot.lane.b32.xlu0 %v31, 21
    %v125 = vpop.permute.xlu0 %124
    %vm126 = vcmp.lt.s32.totalorder %v37, 21
    %v127 = vsel %vm126, %v125, %v123
    %v128 = vpack.c.bf16 %v127, %v127
    %129 = vst [vmem:[#allocation2 + $0x2c] sm:$0xf] %v128
    %130 = vrot.lane.b32.xlu0 %v30, 20
    %v131 = vpop.permute.xlu0 %130
    %132 = vrot.lane.b32.xlu0 %v31, 20
    %v133 = vpop.permute.xlu0 %132
    %vm134 = vcmp.lt.s32.totalorder %v37, 20
    %v135 = vsel %vm134, %v133, %v131
    %v136 = vpack.c.bf16 %v135, %v135
    %137 = vst [vmem:[#allocation2 + $0x30] sm:$0xf] %v136
    %138 = vrot.lane.b32.xlu0 %v30, 19
    %v139 = vpop.permute.xlu0 %138
    %140 = vrot.lane.b32.xlu0 %v31, 19
    %v141 = vpop.permute.xlu0 %140
    %vm142 = vcmp.lt.s32.totalorder %v37, 19
    %v143 = vsel %vm142, %v141, %v139
    %v144 = vpack.c.bf16 %v143, %v143
    %145 = vst [vmem:[#allocation2 + $0x34] sm:$0xf] %v144
    %146 = vrot.lane.b32.xlu0 %v30, 18
    %v147 = vpop.permute.xlu0 %146
    %148 = vrot.lane.b32.xlu0 %v31, 18
    %v149 = vpop.permute.xlu0 %148
    %vm150 = vcmp.lt.s32.totalorder %v37, 18
    %v151 = vsel %vm150, %v149, %v147
    %v152 = vpack.c.bf16 %v151, %v151
    %153 = vst [vmem:[#allocation2 + $0x38] sm:$0xf] %v152
    %154 = vrot.lane.b32.xlu0 %v30, 17
    %v155 = vpop.permute.xlu0 %154
    %156 = vrot.lane.b32.xlu0 %v31, 17
    %v157 = vpop.permute.xlu0 %156
    %vm158 = vcmp.lt.s32.totalorder %v37, 17
    %v159 = vsel %vm158, %v157, %v155
    %v160 = vpack.c.bf16 %v159, %v159
    %161 = vst [vmem:[#allocation2 + $0x3c] sm:$0xf] %v160
    %162 = vrot.lane.b32.xlu0 %v30, 16
    %v163 = vpop.permute.xlu0 %162
    %164 = vrot.lane.b32.xlu0 %v31, 16
    %v165 = vpop.permute.xlu0 %164
    %vm166 = vcmp.lt.s32.totalorder %v37, 16
    %v167 = vsel %vm166, %v165, %v163
    %v168 = vpack.c.bf16 %v167, %v167
    %169 = vst [vmem:[#allocation2 + $0x40] sm:$0xf] %v168
    %170 = vrot.lane.b32.xlu0 %v30, 15
    %v171 = vpop.permute.xlu0 %170
    %172 = vrot.lane.b32.xlu0 %v31, 15
    %v173 = vpop.permute.xlu0 %172
    %vm174 = vcmp.lt.s32.totalorder %v37, 15
    %v175 = vsel %vm174, %v173, %v171
    %v176 = vpack.c.bf16 %v175, %v175
    %177 = vst [vmem:[#allocation2 + $0x44] sm:$0xf] %v176
    %178 = vrot.lane.b32.xlu0 %v30, 14
    %v179 = vpop.permute.xlu0 %178
    %180 = vrot.lane.b32.xlu0 %v31, 14
    %v181 = vpop.permute.xlu0 %180
    %vm182 = vcmp.lt.s32.totalorder %v37, 14
    %v183 = vsel %vm182, %v181, %v179
    %v184 = vpack.c.bf16 %v183, %v183
    %185 = vst [vmem:[#allocation2 + $0x48] sm:$0xf] %v184
    %186 = vrot.lane.b32.xlu0 %v30, 13
    %v187 = vpop.permute.xlu0 %186
    %188 = vrot.lane.b32.xlu0 %v31, 13
    %v189 = vpop.permute.xlu0 %188
    %vm190 = vcmp.lt.s32.totalorder %v37, 13
    %v191 = vsel %vm190, %v189, %v187
    %v192 = vpack.c.bf16 %v191, %v191
    %193 = vst [vmem:[#allocation2 + $0x4c] sm:$0xf] %v192
    %194 = vrot.lane.b32.xlu0 %v30, 12
    %v195 = vpop.permute.xlu0 %194
    %196 = vrot.lane.b32.xlu0 %v31, 12
    %v197 = vpop.permute.xlu0 %196
    %vm198 = vcmp.lt.s32.totalorder %v37, 12
    %v199 = vsel %vm198, %v197, %v195
    %v200 = vpack.c.bf16 %v199, %v199
    %201 = vst [vmem:[#allocation2 + $0x50] sm:$0xf] %v200
    %202 = vrot.lane.b32.xlu0 %v30, 11
    %v203 = vpop.permute.xlu0 %202
    %204 = vrot.lane.b32.xlu0 %v31, 11
    %v205 = vpop.permute.xlu0 %204
    %vm206 = vcmp.lt.s32.totalorder %v37, 11
    %v207 = vsel %vm206, %v205, %v203
    %v208 = vpack.c.bf16 %v207, %v207
    %209 = vst [vmem:[#allocation2 + $0x54] sm:$0xf] %v208
    %210 = vrot.lane.b32.xlu0 %v30, 10
    %v211 = vpop.permute.xlu0 %210
    %212 = vrot.lane.b32.xlu0 %v31, 10
    %v213 = vpop.permute.xlu0 %212
    %vm214 = vcmp.lt.s32.totalorder %v37, 10
    %v215 = vsel %vm214, %v213, %v211
    %v216 = vpack.c.bf16 %v215, %v215
    %217 = vst [vmem:[#allocation2 + $0x58] sm:$0xf] %v216
    %218 = vrot.lane.b32.xlu0 %v30, 9
    %v219 = vpop.permute.xlu0 %218
    %220 = vrot.lane.b32.xlu0 %v31, 9
    %v221 = vpop.permute.xlu0 %220
    %vm222 = vcmp.lt.s32.totalorder %v37, 9
    %v223 = vsel %vm222, %v221, %v219
    %v224 = vpack.c.bf16 %v223, %v223
    %225 = vst [vmem:[#allocation2 + $0x5c] sm:$0xf] %v224
    %226 = vrot.lane.b32.xlu0 %v30, 8
    %v227 = vpop.permute.xlu0 %226
    %228 = vrot.lane.b32.xlu0 %v31, 8
    %v229 = vpop.permute.xlu0 %228
    %vm230 = vcmp.lt.s32.totalorder %v37, 8
    %v231 = vsel %vm230, %v229, %v227
    %v232 = vpack.c.bf16 %v231, %v231
    %233 = vst [vmem:[#allocation2 + $0x60] sm:$0xf] %v232
    %234 = vrot.lane.b32.xlu0 %v30, 7
    %v235 = vpop.permute.xlu0 %234
    %236 = vrot.lane.b32.xlu0 %v31, 7
    %v237 = vpop.permute.xlu0 %236
    %vm238 = vcmp.lt.s32.totalorder %v37, 7
    %v239 = vsel %vm238, %v237, %v235
    %v240 = vpack.c.bf16 %v239, %v239
    %241 = vst [vmem:[#allocation2 + $0x64] sm:$0xf] %v240
    %242 = vrot.lane.b32.xlu0 %v30, 6
    %v243 = vpop.permute.xlu0 %242
    %244 = vrot.lane.b32.xlu0 %v31, 6
    %v245 = vpop.permute.xlu0 %244
    %vm246 = vcmp.lt.s32.totalorder %v37, 6
    %v247 = vsel %vm246, %v245, %v243
    %v248 = vpack.c.bf16 %v247, %v247
    %249 = vst [vmem:[#allocation2 + $0x68] sm:$0xf] %v248
    %250 = vrot.lane.b32.xlu0 %v30, 5
    %v251 = vpop.permute.xlu0 %250
    %252 = vrot.lane.b32.xlu0 %v31, 5
    %v253 = vpop.permute.xlu0 %252
    %vm254 = vcmp.lt.s32.totalorder %v37, 5
    %v255 = vsel %vm254, %v253, %v251
    %v256 = vpack.c.bf16 %v255, %v255
    %257 = vst [vmem:[#allocation2 + $0x6c] sm:$0xf] %v256
    %258 = vrot.lane.b32.xlu0 %v30, 4
    %v259 = vpop.permute.xlu0 %258
    %260 = vrot.lane.b32.xlu0 %v31, 4
    %v261 = vpop.permute.xlu0 %260
    %vm262 = vcmp.lt.s32.totalorder %v37, 4
    %v263 = vsel %vm262, %v261, %v259
    %v264 = vpack.c.bf16 %v263, %v263
    %265 = vst [vmem:[#allocation2 + $0x70] sm:$0xf] %v264
    %266 = vrot.lane.b32.xlu0 %v30, 3
    %v267 = vpop.permute.xlu0 %266
    %268 = vrot.lane.b32.xlu0 %v31, 3
    %v269 = vpop.permute.xlu0 %268
    %vm270 = vcmp.lt.s32.totalorder %v37, 3
    %v271 = vsel %vm270, %v269, %v267
    %v272 = vpack.c.bf16 %v271, %v271
    %273 = vst [vmem:[#allocation2 + $0x74] sm:$0xf] %v272
    %274 = vrot.lane.b32.xlu0 %v30, 2
    %v275 = vpop.permute.xlu0 %274
    %276 = vrot.lane.b32.xlu0 %v31, 2
    %v277 = vpop.permute.xlu0 %276
    %vm278 = vcmp.lt.s32.totalorder %v37, 2
    %v279 = vsel %vm278, %v277, %v275
    %v280 = vpack.c.bf16 %v279, %v279
    %281 = vst [vmem:[#allocation2 + $0x78] sm:$0xf] %v280
    %282 = vrot.lane.b32.xlu0 %v30, 1
    %v283 = vpop.permute.xlu0 %282
    %284 = vrot.lane.b32.xlu0 %v31, 1
    %v285 = vpop.permute.xlu0 %284
    %vm286 = vcmp.lt.s32.totalorder %v37, 1
    %v287 = vsel %vm286, %v285, %v283
    %v288 = vpack.c.bf16 %v287, %v287
    %289 = vst [vmem:[#allocation2 + $0x7c] sm:$0xf] %v288
    %v290 = vpack.c.bf16 %v30, %v30
    %291 = vst [vmem:[#allocation2 + $0x80] sm:$0xf] %v290
    %292 = vrot.lane.b32.xlu0 %v30, 127
    %v293 = vpop.permute.xlu0 %292
    %294 = vrot.lane.b32.xlu0 %v31, 127
    %v295 = vpop.permute.xlu0 %294
    %vm296 = vcmp.lt.s32.totalorder %v37, 127
    %v297 = vsel %vm296, %v293, %v295
    %v298 = vpack.c.bf16 %v297, %v297
    %299 = vst [vmem:[#allocation2 + $0x84] sm:$0xf] %v298
    %300 = vrot.lane.b32.xlu0 %v30, 126
    %v301 = vpop.permute.xlu0 %300
    %302 = vrot.lane.b32.xlu0 %v31, 126
    %v303 = vpop.permute.xlu0 %302
    %vm304 = vcmp.lt.s32.totalorder %v37, 126
    %v305 = vsel %vm304, %v301, %v303
    %v306 = vpack.c.bf16 %v305, %v305
    %307 = vst [vmem:[#allocation2 + $0x88] sm:$0xf] %v306
    %308 = vrot.lane.b32.xlu0 %v30, 125
    %v309 = vpop.permute.xlu0 %308
    %310 = vrot.lane.b32.xlu0 %v31, 125
    %v311 = vpop.permute.xlu0 %310
    %vm312 = vcmp.lt.s32.totalorder %v37, 125
    %v313 = vsel %vm312, %v309, %v311
    %v314 = vpack.c.bf16 %v313, %v313
    %315 = vst [vmem:[#allocation2 + $0x8c] sm:$0xf] %v314
    %316 = vrot.lane.b32.xlu0 %v30, 124
    %v317 = vpop.permute.xlu0 %316
    %318 = vrot.lane.b32.xlu0 %v31, 124
    %v319 = vpop.permute.xlu0 %318
    %vm320 = vcmp.lt.s32.totalorder %v37, 124
    %v321 = vsel %vm320, %v317, %v319
    %v322 = vpack.c.bf16 %v321, %v321
    %323 = vst [vmem:[#allocation2 + $0x90] sm:$0xf] %v322
    %324 = vrot.lane.b32.xlu0 %v30, 123
    %v325 = vpop.permute.xlu0 %324
    %326 = vrot.lane.b32.xlu0 %v31, 123
    %v327 = vpop.permute.xlu0 %326
    %vm328 = vcmp.lt.s32.totalorder %v37, 123
    %v329 = vsel %vm328, %v325, %v327
    %v330 = vpack.c.bf16 %v329, %v329
    %331 = vst [vmem:[#allocation2 + $0x94] sm:$0xf] %v330
    %332 = vrot.lane.b32.xlu0 %v30, 122
    %v333 = vpop.permute.xlu0 %332
    %334 = vrot.lane.b32.xlu0 %v31, 122
    %v335 = vpop.permute.xlu0 %334
    %vm336 = vcmp.lt.s32.totalorder %v37, 122
    %v337 = vsel %vm336, %v333, %v335
    %v338 = vpack.c.bf16 %v337, %v337
    %339 = vst [vmem:[#allocation2 + $0x98] sm:$0xf] %v338
    %340 = vrot.lane.b32.xlu0 %v30, 121
    %v341 = vpop.permute.xlu0 %340
    %342 = vrot.lane.b32.xlu0 %v31, 121
    %v343 = vpop.permute.xlu0 %342
    %vm344 = vcmp.lt.s32.totalorder %v37, 121
    %v345 = vsel %vm344, %v341, %v343
    %v346 = vpack.c.bf16 %v345, %v345
    %347 = vst [vmem:[#allocation2 + $0x9c] sm:$0xf] %v346
    %348 = vrot.lane.b32.xlu0 %v30, 120
    %v349 = vpop.permute.xlu0 %348
    %350 = vrot.lane.b32.xlu0 %v31, 120
    %v351 = vpop.permute.xlu0 %350
    %vm352 = vcmp.lt.s32.totalorder %v37, 120
    %v353 = vsel %vm352, %v349, %v351
    %v354 = vpack.c.bf16 %v353, %v353
    %355 = vst [vmem:[#allocation2 + $0xa0] sm:$0xf] %v354
    %356 = vrot.lane.b32.xlu0 %v30, 119
    %v357 = vpop.permute.xlu0 %356
    %358 = vrot.lane.b32.xlu0 %v31, 119
    %v359 = vpop.permute.xlu0 %358
    %vm360 = vcmp.lt.s32.totalorder %v37, 119
    %v361 = vsel %vm360, %v357, %v359
    %v362 = vpack.c.bf16 %v361, %v361
    %363 = vst [vmem:[#allocation2 + $0xa4] sm:$0xf] %v362
    %364 = vrot.lane.b32.xlu0 %v30, 118
    %v365 = vpop.permute.xlu0 %364
    %366 = vrot.lane.b32.xlu0 %v31, 118
    %v367 = vpop.permute.xlu0 %366
    %vm368 = vcmp.lt.s32.totalorder %v37, 118
    %v369 = vsel %vm368, %v365, %v367
    %v370 = vpack.c.bf16 %v369, %v369
    %371 = vst [vmem:[#allocation2 + $0xa8] sm:$0xf] %v370
    %372 = vrot.lane.b32.xlu0 %v30, 117
    %v373 = vpop.permute.xlu0 %372
    %374 = vrot.lane.b32.xlu0 %v31, 117
    %v375 = vpop.permute.xlu0 %374
    %vm376 = vcmp.lt.s32.totalorder %v37, 117
    %v377 = vsel %vm376, %v373, %v375
    %v378 = vpack.c.bf16 %v377, %v377
    %379 = vst [vmem:[#allocation2 + $0xac] sm:$0xf] %v378
    %380 = vrot.lane.b32.xlu0 %v30, 116
    %v381 = vpop.permute.xlu0 %380
    %382 = vrot.lane.b32.xlu0 %v31, 116
    %v383 = vpop.permute.xlu0 %382
    %vm384 = vcmp.lt.s32.totalorder %v37, 116
    %v385 = vsel %vm384, %v381, %v383
    %v386 = vpack.c.bf16 %v385, %v385
    %387 = vst [vmem:[#allocation2 + $0xb0] sm:$0xf] %v386
    %388 = vrot.lane.b32.xlu0 %v30, 115
    %v389 = vpop.permute.xlu0 %388
    %390 = vrot.lane.b32.xlu0 %v31, 115
    %v391 = vpop.permute.xlu0 %390
    %vm392 = vcmp.lt.s32.totalorder %v37, 115
    %v393 = vsel %vm392, %v389, %v391
    %v394 = vpack.c.bf16 %v393, %v393
    %395 = vst [vmem:[#allocation2 + $0xb4] sm:$0xf] %v394
    %396 = vrot.lane.b32.xlu0 %v30, 114
    %v397 = vpop.permute.xlu0 %396
    %398 = vrot.lane.b32.xlu0 %v31, 114
    %v399 = vpop.permute.xlu0 %398
    %vm400 = vcmp.lt.s32.totalorder %v37, 114
    %v401 = vsel %vm400, %v397, %v399
    %v402 = vpack.c.bf16 %v401, %v401
    %403 = vst [vmem:[#allocation2 + $0xb8] sm:$0xf] %v402
    %404 = vrot.lane.b32.xlu0 %v30, 113
    %v405 = vpop.permute.xlu0 %404
    %406 = vrot.lane.b32.xlu0 %v31, 113
    %v407 = vpop.permute.xlu0 %406
    %vm408 = vcmp.lt.s32.totalorder %v37, 113
    %v409 = vsel %vm408, %v405, %v407
    %v410 = vpack.c.bf16 %v409, %v409
    %411 = vst [vmem:[#allocation2 + $0xbc] sm:$0xf] %v410
    %412 = vrot.lane.b32.xlu0 %v30, 112
    %v413 = vpop.permute.xlu0 %412
    %414 = vrot.lane.b32.xlu0 %v31, 112
    %v415 = vpop.permute.xlu0 %414
    %vm416 = vcmp.lt.s32.totalorder %v37, 112
    %v417 = vsel %vm416, %v413, %v415
    %v418 = vpack.c.bf16 %v417, %v417
    %419 = vst [vmem:[#allocation2 + $0xc0] sm:$0xf] %v418
    %420 = vrot.lane.b32.xlu0 %v30, 111
    %v421 = vpop.permute.xlu0 %420
    %422 = vrot.lane.b32.xlu0 %v31, 111
    %v423 = vpop.permute.xlu0 %422
    %vm424 = vcmp.lt.s32.totalorder %v37, 111
    %v425 = vsel %vm424, %v421, %v423
    %v426 = vpack.c.bf16 %v425, %v425
    %427 = vst [vmem:[#allocation2 + $0xc4] sm:$0xf] %v426
    %428 = vrot.lane.b32.xlu0 %v30, 110
    %v429 = vpop.permute.xlu0 %428
    %430 = vrot.lane.b32.xlu0 %v31, 110
    %v431 = vpop.permute.xlu0 %430
    %vm432 = vcmp.lt.s32.totalorder %v37, 110
    %v433 = vsel %vm432, %v429, %v431
    %v434 = vpack.c.bf16 %v433, %v433
    %435 = vst [vmem:[#allocation2 + $0xc8] sm:$0xf] %v434
    %436 = vrot.lane.b32.xlu0 %v30, 109
    %v437 = vpop.permute.xlu0 %436
    %438 = vrot.lane.b32.xlu0 %v31, 109
    %v439 = vpop.permute.xlu0 %438
    %vm440 = vcmp.lt.s32.totalorder %v37, 109
    %v441 = vsel %vm440, %v437, %v439
    %v442 = vpack.c.bf16 %v441, %v441
    %443 = vst [vmem:[#allocation2 + $0xcc] sm:$0xf] %v442
    %444 = vrot.lane.b32.xlu0 %v30, 108
    %v445 = vpop.permute.xlu0 %444
    %446 = vrot.lane.b32.xlu0 %v31, 108
    %v447 = vpop.permute.xlu0 %446
    %vm448 = vcmp.lt.s32.totalorder %v37, 108
    %v449 = vsel %vm448, %v445, %v447
    %v450 = vpack.c.bf16 %v449, %v449
    %451 = vst [vmem:[#allocation2 + $0xd0] sm:$0xf] %v450
    %452 = vrot.lane.b32.xlu0 %v30, 107
    %v453 = vpop.permute.xlu0 %452
    %454 = vrot.lane.b32.xlu0 %v31, 107
    %v455 = vpop.permute.xlu0 %454
    %vm456 = vcmp.lt.s32.totalorder %v37, 107
    %v457 = vsel %vm456, %v453, %v455
    %v458 = vpack.c.bf16 %v457, %v457
    %459 = vst [vmem:[#allocation2 + $0xd4] sm:$0xf] %v458
    %460 = vrot.lane.b32.xlu0 %v30, 106
    %v461 = vpop.permute.xlu0 %460
    %462 = vrot.lane.b32.xlu0 %v31, 106
    %v463 = vpop.permute.xlu0 %462
    %vm464 = vcmp.lt.s32.totalorder %v37, 106
    %v465 = vsel %vm464, %v461, %v463
    %v466 = vpack.c.bf16 %v465, %v465
    %467 = vst [vmem:[#allocation2 + $0xd8] sm:$0xf] %v466
    %468 = vrot.lane.b32.xlu0 %v30, 105
    %v469 = vpop.permute.xlu0 %468
    %470 = vrot.lane.b32.xlu0 %v31, 105
    %v471 = vpop.permute.xlu0 %470
    %vm472 = vcmp.lt.s32.totalorder %v37, 105
    %v473 = vsel %vm472, %v469, %v471
    %v474 = vpack.c.bf16 %v473, %v473
    %475 = vst [vmem:[#allocation2 + $0xdc] sm:$0xf] %v474
    %476 = vrot.lane.b32.xlu0 %v30, 104
    %v477 = vpop.permute.xlu0 %476
    %478 = vrot.lane.b32.xlu0 %v31, 104
    %v479 = vpop.permute.xlu0 %478
    %vm480 = vcmp.lt.s32.totalorder %v37, 104
    %v481 = vsel %vm480, %v477, %v479
    %v482 = vpack.c.bf16 %v481, %v481
    %483 = vst [vmem:[#allocation2 + $0xe0] sm:$0xf] %v482
    %484 = vrot.lane.b32.xlu0 %v30, 103
    %v485 = vpop.permute.xlu0 %484
    %486 = vrot.lane.b32.xlu0 %v31, 103
    %v487 = vpop.permute.xlu0 %486
    %vm488 = vcmp.lt.s32.totalorder %v37, 103
    %v489 = vsel %vm488, %v485, %v487
    %v490 = vpack.c.bf16 %v489, %v489
    %491 = vst [vmem:[#allocation2 + $0xe4] sm:$0xf] %v490
    %492 = vrot.lane.b32.xlu0 %v30, 102
    %v493 = vpop.permute.xlu0 %492
    %494 = vrot.lane.b32.xlu0 %v31, 102
    %v495 = vpop.permute.xlu0 %494
    %vm496 = vcmp.lt.s32.totalorder %v37, 102
    %v497 = vsel %vm496, %v493, %v495
    %v498 = vpack.c.bf16 %v497, %v497
    %499 = vst [vmem:[#allocation2 + $0xe8] sm:$0xf] %v498
    %500 = vrot.lane.b32.xlu0 %v30, 101
    %v501 = vpop.permute.xlu0 %500
    %502 = vrot.lane.b32.xlu0 %v31, 101
    %v503 = vpop.permute.xlu0 %502
    %vm504 = vcmp.lt.s32.totalorder %v37, 101
    %v505 = vsel %vm504, %v501, %v503
    %v506 = vpack.c.bf16 %v505, %v505
    %507 = vst [vmem:[#allocation2 + $0xec] sm:$0xf] %v506
    %508 = vrot.lane.b32.xlu0 %v30, 100
    %v509 = vpop.permute.xlu0 %508
    %510 = vrot.lane.b32.xlu0 %v31, 100
    %v511 = vpop.permute.xlu0 %510
    %vm512 = vcmp.lt.s32.totalorder %v37, 100
    %v513 = vsel %vm512, %v509, %v511
    %v514 = vpack.c.bf16 %v513, %v513
    %515 = vst [vmem:[#allocation2 + $0xf0] sm:$0xf] %v514
    %516 = vrot.lane.b32.xlu0 %v30, 99
    %v517 = vpop.permute.xlu0 %516
    %518 = vrot.lane.b32.xlu0 %v31, 99
    %v519 = vpop.permute.xlu0 %518
    %vm520 = vcmp.lt.s32.totalorder %v37, 99
    %v521 = vsel %vm520, %v517, %v519
    %v522 = vpack.c.bf16 %v521, %v521
    %523 = vst [vmem:[#allocation2 + $0xf4] sm:$0xf] %v522
    %524 = vrot.lane.b32.xlu0 %v30, 98
    %v525 = vpop.permute.xlu0 %524
    %526 = vrot.lane.b32.xlu0 %v31, 98
    %v527 = vpop.permute.xlu0 %526
    %vm528 = vcmp.lt.s32.totalorder %v37, 98
    %v529 = vsel %vm528, %v525, %v527
    %v530 = vpack.c.bf16 %v529, %v529
    %531 = vst [vmem:[#allocation2 + $0xf8] sm:$0xf] %v530
    %532 = vrot.lane.b32.xlu0 %v30, 97
    %v533 = vpop.permute.xlu0 %532
    %534 = vrot.lane.b32.xlu0 %v31, 97
    %v535 = vpop.permute.xlu0 %534
    %vm536 = vcmp.lt.s32.totalorder %v37, 97
    %v537 = vsel %vm536, %v533, %v535
    %v538 = vpack.c.bf16 %v537, %v537
    %539 = vst [vmem:[#allocation2 + $0xfc] sm:$0xf] %v538
    %v540 = vld [vmem:[%s1] sm:$0xff]
    %v541 = vld [vmem:[%s1 + $0x8] sm:$0xff]
    %v542 = vld [vmem:[%s1 + $0x10] sm:$0xff]
    %v543 = vld [vmem:[%s1 + $0x18] sm:$0xff]
    %v544 = vld [vmem:[%s1 + $0x20] sm:$0xff]
    %v545 = vld [vmem:[%s1 + $0x28] sm:$0xff]
    %v546 = vld [vmem:[%s1 + $0x30] sm:$0xff]
    %v547 = vld [vmem:[%s1 + $0x38] sm:$0xff]
    %v548 = vld [vmem:[#allocation2] sm:$0xf]
    %v549 = vld [vmem:[#allocation2 + $0x4] sm:$0xf]
    %v550 = vld [vmem:[#allocation2 + $0x8] sm:$0xf]
    %v551 = vld [vmem:[#allocation2 + $0xc] sm:$0xf]
    %v552 = vld [vmem:[#allocation2 + $0x10] sm:$0xf]
    %v553 = vld [vmem:[#allocation2 + $0x14] sm:$0xf]
    %v554 = vld [vmem:[#allocation2 + $0x18] sm:$0xf]
    %v555 = vld [vmem:[#allocation2 + $0x1c] sm:$0xf]
    %v556 = vld [vmem:[#allocation2 + $0x20] sm:$0xf]
    %v557 = vld [vmem:[#allocation2 + $0x24] sm:$0xf]
    %v558 = vld [vmem:[#allocation2 + $0x28] sm:$0xf]
    %v559 = vld [vmem:[#allocation2 + $0x2c] sm:$0xf]
    %v560 = vld [vmem:[#allocation2 + $0x30] sm:$0xf]
    %v561 = vld [vmem:[#allocation2 + $0x34] sm:$0xf]
    %v562 = vld [vmem:[#allocation2 + $0x38] sm:$0xf]
    %v563 = vld [vmem:[#allocation2 + $0x3c] sm:$0xf]
    %v564 = vld [vmem:[#allocation2 + $0x40] sm:$0xf]
    %v565 = vld [vmem:[#allocation2 + $0x44] sm:$0xf]
    %v566 = vld [vmem:[#allocation2 + $0x48] sm:$0xf]
    %v567 = vld [vmem:[#allocation2 + $0x4c] sm:$0xf]
    %v568 = vld [vmem:[#allocation2 + $0x50] sm:$0xf]
    %v569 = vld [vmem:[#allocation2 + $0x54] sm:$0xf]
    %v570 = vld [vmem:[#allocation2 + $0x58] sm:$0xf]
    %v571 = vld [vmem:[#allocation2 + $0x5c] sm:$0xf]
    %v572 = vld [vmem:[#allocation2 + $0x60] sm:$0xf]
    %v573 = vld [vmem:[#allocation2 + $0x64] sm:$0xf]
    %v574 = vld [vmem:[#allocation2 + $0x68] sm:$0xf]
    %v575 = vld [vmem:[#allocation2 + $0x6c] sm:$0xf]
    %v576 = vld [vmem:[#allocation2 + $0x70] sm:$0xf]
    %v577 = vld [vmem:[#allocation2 + $0x74] sm:$0xf]
    %v578 = vld [vmem:[#allocation2 + $0x78] sm:$0xf]
    %v579 = vld [vmem:[#allocation2 + $0x7c] sm:$0xf]
    %v580 = vld [vmem:[#allocation2 + $0x80] sm:$0xf]
    %v581 = vld [vmem:[#allocation2 + $0x84] sm:$0xf]
    %v582 = vld [vmem:[#allocation2 + $0x88] sm:$0xf]
    %v583 = vld [vmem:[#allocation2 + $0x8c] sm:$0xf]
    %v584 = vld [vmem:[#allocation2 + $0x90] sm:$0xf]
    %v585 = vld [vmem:[#allocation2 + $0x94] sm:$0xf]
    %v586 = vld [vmem:[#allocation2 + $0x98] sm:$0xf]
    %v587 = vld [vmem:[#allocation2 + $0x9c] sm:$0xf]
    %v588 = vld [vmem:[#allocation2 + $0xa0] sm:$0xf]
    %v589 = vld [vmem:[#allocation2 + $0xa4] sm:$0xf]
    %v590 = vld [vmem:[#allocation2 + $0xa8] sm:$0xf]
    %v591 = vld [vmem:[#allocation2 + $0xac] sm:$0xf]
    %v592 = vld [vmem:[#allocation2 + $0xb0] sm:$0xf]
    %v593 = vld [vmem:[#allocation2 + $0xb4] sm:$0xf]
    %v594 = vld [vmem:[#allocation2 + $0xb8] sm:$0xf]
    %v595 = vld [vmem:[#allocation2 + $0xbc] sm:$0xf]
    %v596 = vld [vmem:[#allocation2 + $0xc0] sm:$0xf]
    %v597 = vld [vmem:[#allocation2 + $0xc4] sm:$0xf]
    %v598 = vld [vmem:[#allocation2 + $0xc8] sm:$0xf]
    %v599 = vld [vmem:[#allocation2 + $0xcc] sm:$0xf]
    %v600 = vld [vmem:[#allocation2 + $0xd0] sm:$0xf]
    %v601 = vld [vmem:[#allocation2 + $0xd4] sm:$0xf]
    %v602 = vld [vmem:[#allocation2 + $0xd8] sm:$0xf]
    %v603 = vld [vmem:[#allocation2 + $0xdc] sm:$0xf]
    %v604 = vld [vmem:[#allocation2 + $0xe0] sm:$0xf]
    %v605 = vld [vmem:[#allocation2 + $0xe4] sm:$0xf]
    %v606 = vld [vmem:[#allocation2 + $0xe8] sm:$0xf]
    %v607 = vld [vmem:[#allocation2 + $0xec] sm:$0xf]
    %v608 = vld [vmem:[#allocation2 + $0xf0] sm:$0xf]
    %v609 = vld [vmem:[#allocation2 + $0xf4] sm:$0xf]
    %v610 = vld [vmem:[#allocation2 + $0xf8] sm:$0xf]
    %v611 = vld [vmem:[#allocation2 + $0xfc] sm:$0xf]
    %v612 = vld [vmem:[%s5] sm:$0xff]
    %v613 = vld [vmem:[%s5 + $0x8] sm:$0xff]
    %v614 = vld [vmem:[%s5 + $0x10] sm:$0xff]
    %v615 = vld [vmem:[%s5 + $0x18] sm:$0xff]
    %617 = vset.pattern.permute.xlu0 0
    %618 = vperm.xlu0 %617, %v612
    %v619 = vpop.permute.xlu0 %618
    %622 = vset.pattern.permute.xlu0 0
    %623 = vperm.xlu0 %622, %v613
    %v624 = vpop.permute.xlu0 %623
    %627 = vset.pattern.permute.xlu0 0
    %628 = vperm.xlu0 %627, %v614
    %v629 = vpop.permute.xlu0 %628
    %632 = vset.pattern.permute.xlu0 0
    %633 = vperm.xlu0 %632, %v615
    %v634 = vpop.permute.xlu0 %633
    %v644 = vunpack.c.l.b16 %v540
    %v645 = vunpack.c.h.b16 %v540
    %v646 = vunpack.c.l.b16 %v541
    %v647 = vunpack.c.h.b16 %v541
    %v648 = vunpack.c.l.b16 %v542
    %v649 = vunpack.c.h.b16 %v542
    %v650 = vunpack.c.l.b16 %v543
    %v651 = vunpack.c.h.b16 %v543
    %v652 = vunpack.c.l.b16 %v544
    %v653 = vunpack.c.h.b16 %v544
    %v654 = vunpack.c.l.b16 %v545
    %v655 = vunpack.c.h.b16 %v545
    %v656 = vunpack.c.l.b16 %v546
    %v657 = vunpack.c.h.b16 %v546
    %v658 = vunpack.c.l.b16 %v547
    %v659 = vunpack.c.h.b16 %v547
    %v660 = vpack.c.b16 %v648, %v644
    %v661 = vpack.c.b16 %v649, %v645
    %v662 = vpack.c.b16 %v650, %v646
    %v663 = vpack.c.b16 %v651, %v647
    %v664 = vpack.c.b16 %v656, %v652
    %v665 = vpack.c.b16 %v657, %v653
    %v666 = vpack.c.b16 %v658, %v654
    %v667 = vpack.c.b16 %v659, %v655
    %v740 = vunpack.c.l.b16 %v548
    %v741 = vunpack.c.l.b16 %v549
    %v742 = vunpack.c.l.b16 %v550
    %v743 = vunpack.c.l.b16 %v551
    %v744 = vunpack.c.l.b16 %v552
    %v745 = vunpack.c.l.b16 %v553
    %v746 = vunpack.c.l.b16 %v554
    %v747 = vunpack.c.l.b16 %v555
    %v748 = vunpack.c.l.b16 %v556
    %v749 = vunpack.c.l.b16 %v557
    %v750 = vunpack.c.l.b16 %v558
    %v751 = vunpack.c.l.b16 %v559
    %v752 = vunpack.c.l.b16 %v560
    %v753 = vunpack.c.l.b16 %v561
    %v754 = vunpack.c.l.b16 %v562
    %v755 = vunpack.c.l.b16 %v563
    %v756 = vunpack.c.l.b16 %v564
    %v757 = vunpack.c.l.b16 %v565
    %v758 = vunpack.c.l.b16 %v566
    %v759 = vunpack.c.l.b16 %v567
    %v760 = vunpack.c.l.b16 %v568
    %v761 = vunpack.c.l.b16 %v569
    %v762 = vunpack.c.l.b16 %v570
    %v763 = vunpack.c.l.b16 %v571
    %v764 = vunpack.c.l.b16 %v572
    %v765 = vunpack.c.l.b16 %v573
    %v766 = vunpack.c.l.b16 %v574
    %v767 = vunpack.c.l.b16 %v575
    %v768 = vunpack.c.l.b16 %v576
    %v769 = vunpack.c.l.b16 %v577
    %v770 = vunpack.c.l.b16 %v578
    %v771 = vunpack.c.l.b16 %v579
    %v772 = vunpack.c.l.b16 %v580
    %v773 = vunpack.c.l.b16 %v581
    %v774 = vunpack.c.l.b16 %v582
    %v775 = vunpack.c.l.b16 %v583
    %v776 = vunpack.c.l.b16 %v584
    %v777 = vunpack.c.l.b16 %v585
    %v778 = vunpack.c.l.b16 %v586
    %v779 = vunpack.c.l.b16 %v587
    %v780 = vunpack.c.l.b16 %v588
    %v781 = vunpack.c.l.b16 %v589
    %v782 = vunpack.c.l.b16 %v590
    %v783 = vunpack.c.l.b16 %v591
    %v784 = vunpack.c.l.b16 %v592
    %v785 = vunpack.c.l.b16 %v593
    %v786 = vunpack.c.l.b16 %v594
    %v787 = vunpack.c.l.b16 %v595
    %v788 = vunpack.c.l.b16 %v596
    %v789 = vunpack.c.l.b16 %v597
    %v790 = vunpack.c.l.b16 %v598
    %v791 = vunpack.c.l.b16 %v599
    %v792 = vunpack.c.l.b16 %v600
    %v793 = vunpack.c.l.b16 %v601
    %v794 = vunpack.c.l.b16 %v602
    %v795 = vunpack.c.l.b16 %v603
    %v796 = vunpack.c.l.b16 %v604
    %v797 = vunpack.c.l.b16 %v605
    %v798 = vunpack.c.l.b16 %v606
    %v799 = vunpack.c.l.b16 %v607
    %v800 = vunpack.c.l.b16 %v608
    %v801 = vunpack.c.l.b16 %v609
    %v802 = vunpack.c.l.b16 %v610
    %v803 = vunpack.c.l.b16 %v611
    %v804 = vpack.c.b16 %v741, %v740
    %v805 = vpack.c.b16 %v743, %v742
    %v806 = vpack.c.b16 %v745, %v744
    %v807 = vpack.c.b16 %v747, %v746
    %v808 = vpack.c.b16 %v749, %v748
    %v809 = vpack.c.b16 %v751, %v750
    %v810 = vpack.c.b16 %v753, %v752
    %v811 = vpack.c.b16 %v755, %v754
    %v812 = vpack.c.b16 %v757, %v756
    %v813 = vpack.c.b16 %v759, %v758
    %v814 = vpack.c.b16 %v761, %v760
    %v815 = vpack.c.b16 %v763, %v762
    %v816 = vpack.c.b16 %v765, %v764
    %v817 = vpack.c.b16 %v767, %v766
    %v818 = vpack.c.b16 %v769, %v768
    %v819 = vpack.c.b16 %v771, %v770
    %v820 = vpack.c.b16 %v773, %v772
    %v821 = vpack.c.b16 %v775, %v774
    %v822 = vpack.c.b16 %v777, %v776
    %v823 = vpack.c.b16 %v779, %v778
    %v824 = vpack.c.b16 %v781, %v780
    %v825 = vpack.c.b16 %v783, %v782
    %v826 = vpack.c.b16 %v785, %v784
    %v827 = vpack.c.b16 %v787, %v786
    %v828 = vpack.c.b16 %v789, %v788
    %v829 = vpack.c.b16 %v791, %v790
    %v830 = vpack.c.b16 %v793, %v792
    %v831 = vpack.c.b16 %v795, %v794
    %v832 = vpack.c.b16 %v797, %v796
    %v833 = vpack.c.b16 %v799, %v798
    %v834 = vpack.c.b16 %v801, %v800
    %v835 = vpack.c.b16 %v803, %v802
    %868 = vmatpush.bf16.msra.mxu0 %v811
    %869 = vmatpush.bf16.msra.mxu0 %v810
    %870 = vmatpush.bf16.msra.mxu0 %v809
    %871 = vmatpush.bf16.msra.mxu0 %v808
    %872 = vmatpush.bf16.msra.mxu0 %v807
    %873 = vmatpush.bf16.msra.mxu0 %v806
    %874 = vmatpush.bf16.msra.mxu0 %v805
    %875 = vmatpush.bf16.msra.mxu0 %v804
    %876 = vmatmul.bf16.gmra.mxu0 %v660
    %v877 = vpop.f32.mrf.mxu0
    %v878 = vadd.f32 %v619, %v877
    %v879 = vpop.f32.mrf.mxu0
    %v880 = vadd.f32 %v624, %v879
    %881 = vmatmul.bf16.gmra.mxu0 %v664
    %v882 = vpop.f32.mrf.mxu0
    %v883 = vadd.f32 %v629, %v882
    %v884 = vpop.f32.mrf.mxu0
    %v885 = vadd.f32 %v634, %v884
    %886 = vdwg.mxu0
    %887 = vmatpush.bf16.msra.mxu0 %v819
    %888 = vmatpush.bf16.msra.mxu0 %v818
    %889 = vmatpush.bf16.msra.mxu0 %v817
    %890 = vmatpush.bf16.msra.mxu0 %v816
    %891 = vmatpush.bf16.msra.mxu0 %v815
    %892 = vmatpush.bf16.msra.mxu0 %v814
    %893 = vmatpush.bf16.msra.mxu0 %v813
    %894 = vmatpush.bf16.msra.mxu0 %v812
    %895 = vmatmul.bf16.gmra.mxu0 %v661
    %v896 = vpop.f32.mrf.mxu0
    %v897 = vadd.f32 %v878, %v896
    %v898 = vpop.f32.mrf.mxu0
    %v899 = vadd.f32 %v880, %v898
    %900 = vmatmul.bf16.gmra.mxu0 %v665
    %v901 = vpop.f32.mrf.mxu0
    %v902 = vadd.f32 %v883, %v901
    %v903 = vpop.f32.mrf.mxu0
    %v904 = vadd.f32 %v885, %v903
    %905 = vdwg.mxu0
    %906 = vmatpush.bf16.msra.mxu0 %v827
    %907 = vmatpush.bf16.msra.mxu0 %v826
    %908 = vmatpush.bf16.msra.mxu0 %v825
    %909 = vmatpush.bf16.msra.mxu0 %v824
    %910 = vmatpush.bf16.msra.mxu0 %v823
    %911 = vmatpush.bf16.msra.mxu0 %v822
    %912 = vmatpush.bf16.msra.mxu0 %v821
    %913 = vmatpush.bf16.msra.mxu0 %v820
    %914 = vmatmul.bf16.gmra.mxu0 %v662
    %v915 = vpop.f32.mrf.mxu0
    %v916 = vadd.f32 %v897, %v915
    %v917 = vpop.f32.mrf.mxu0
    %v918 = vadd.f32 %v899, %v917
    %919 = vmatmul.bf16.gmra.mxu0 %v666
    %v920 = vpop.f32.mrf.mxu0
    %v921 = vadd.f32 %v902, %v920
    %v922 = vpop.f32.mrf.mxu0
    %v923 = vadd.f32 %v904, %v922
    %924 = vdwg.mxu0
    %925 = vmatpush.bf16.msra.mxu0 %v835
    %926 = vmatpush.bf16.msra.mxu0 %v834
    %927 = vmatpush.bf16.msra.mxu0 %v833
    %928 = vmatpush.bf16.msra.mxu0 %v832
    %929 = vmatpush.bf16.msra.mxu0 %v831
    %930 = vmatpush.bf16.msra.mxu0 %v830
    %931 = vmatpush.bf16.msra.mxu0 %v829
    %932 = vmatpush.bf16.msra.mxu0 %v828
    %933 = vmatmul.bf16.gmra.mxu0 %v663
    %v934 = vpop.f32.mrf.mxu0
    %v935 = vadd.f32 %v916, %v934
    %v936 = vpop.f32.mrf.mxu0
    %v937 = vadd.f32 %v918, %v936
    %938 = vmatmul.bf16.gmra.mxu0 %v667
    %v939 = vpop.f32.mrf.mxu0
    %v940 = vadd.f32 %v921, %v939
    %v941 = vpop.f32.mrf.mxu0
    %v942 = vadd.f32 %v923, %v941
    %943 = vdwg.mxu0
    %vm944 = vcmp.gt.f32.partialorder %v935, 0.0
    %vm945 = vcmp.gt.f32.partialorder %v937, 0.0
    %vm946 = vcmp.gt.f32.partialorder %v940, 0.0
    %vm947 = vcmp.gt.f32.partialorder %v942, 0.0
    %v948 = vmin.f32 %v935, 0.0
    %v949 = vmin.f32 %v937, 0.0
    %v950 = vmin.f32 %v940, 0.0
    %v951 = vmin.f32 %v942, 0.0
    %v952 = vmul.f32 %v948, 1.442695
    %v953 = vpow.pop %v952
    %v954 = vmul.f32 %v949, 1.442695
    %v955 = vpow.pop %v954
    %v956 = vmul.f32 %v950, 1.442695
    %v957 = vpow.pop %v956
    %v958 = vmul.f32 %v951, 1.442695
    %v959 = vpow.pop %v958
    %v960 = vsub.f32 %v953, 1.0
    %v961 = vsub.f32 %v955, 1.0
    %v962 = vsub.f32 %v957, 1.0
    %v963 = vsub.f32 %v959, 1.0
    %v964 = vsel %vm944, %v935, %v960
    %v965 = vsel %vm945, %v937, %v961
    %v966 = vsel %vm946, %v940, %v962
    %v967 = vsel %vm947, %v942, %v963
    %v968 = vld [vmem:[%s2] sm:$0xff]
    %v969 = vld [vmem:[%s2 + $0x8] sm:$0xff]
    %v970 = vld [vmem:[%s2 + $0x10] sm:$0xff]
    %v971 = vld [vmem:[%s2 + $0x18] sm:$0xff]
    %v972 = vld [vmem:[%s2 + $0x20] sm:$0xff]
    %v973 = vld [vmem:[%s2 + $0x28] sm:$0xff]
    %v974 = vld [vmem:[%s2 + $0x30] sm:$0xff]
    %v975 = vld [vmem:[%s2 + $0x38] sm:$0xff]
    %v976 = vld [vmem:[%s2 + $0x40] sm:$0xff]
    %v977 = vld [vmem:[%s2 + $0x48] sm:$0xff]
    %v978 = vld [vmem:[%s2 + $0x50] sm:$0xff]
    %v979 = vld [vmem:[%s2 + $0x58] sm:$0xff]
    %v980 = vld [vmem:[%s2 + $0x60] sm:$0xff]
    %v981 = vld [vmem:[%s2 + $0x68] sm:$0xff]
    %v982 = vld [vmem:[%s2 + $0x70] sm:$0xff]
    %v983 = vld [vmem:[%s2 + $0x78] sm:$0xff]
    %984 = vmatpush.msra.mxu0 %v983
    %985 = vmatpush.msra.mxu0 %v982
    %986 = vmatpush.msra.mxu0 %v981
    %987 = vmatpush.msra.mxu0 %v980
    %988 = vmatpush.msra.mxu0 %v979
    %989 = vmatpush.msra.mxu0 %v978
    %990 = vmatpush.msra.mxu0 %v977
    %991 = vmatpush.msra.mxu0 %v976
    %992 = vmatpush.msra.mxu0 %v975
    %993 = vmatpush.msra.mxu0 %v974
    %994 = vmatpush.msra.mxu0 %v973
    %995 = vmatpush.msra.mxu0 %v972
    %996 = vmatpush.msra.mxu0 %v971
    %997 = vmatpush.msra.mxu0 %v970
    %998 = vmatpush.msra.mxu0 %v969
    %999 = vmatpush.msra.mxu0 %v968
    %1000 = vmatmul.f32.gmra.mxu0 %v964
    %v1001 = vpop.f32.mrf.mxu0
    %v1002 = vadd.f32 0.0, %v1001
    %1003 = vmatmul.f32.gmra.mxu0 %v965
    %v1004 = vpop.f32.mrf.mxu0
    %v1005 = vadd.f32 0.0, %v1004
    %1006 = vmatmul.f32.gmra.mxu0 %v966
    %v1007 = vpop.f32.mrf.mxu0
    %v1008 = vadd.f32 0.0, %v1007
    %1009 = vmatmul.f32.gmra.mxu0 %v967
    %v1010 = vpop.f32.mrf.mxu0
    %v1011 = vadd.f32 0.0, %v1010
    %1012 = vdwg.mxu0
    %v1013 = vpack.c.bf16 %v1002, %v1002
    %v1014 = vpack.c.bf16 %v1005, %v1005
    %v1015 = vpack.c.bf16 %v1008, %v1008
    %v1016 = vpack.c.bf16 %v1011, %v1011
    %1017 = vst [vmem:[#allocation3] sm:$0xf] %v1013
    %1018 = vst [vmem:[#allocation3 + $0x4] sm:$0xf] %v1014
    %1019 = vst [vmem:[#allocation3 + $0x8] sm:$0xf] %v1015
    %1020 = vst [vmem:[#allocation3 + $0xc] sm:$0xf] %v1016
    %1021 = vrot.lane.b32.xlu0 %v1002, 127
    %v1022 = vpop.permute.xlu0 %1021
    %1023 = vrot.lane.b32.xlu0 %v1005, 127
    %v1024 = vpop.permute.xlu0 %1023
    %1025 = vrot.lane.b32.xlu0 %v1008, 127
    %v1026 = vpop.permute.xlu0 %1025
    %1027 = vrot.lane.b32.xlu0 %v1011, 127
    %v1028 = vpop.permute.xlu0 %1027
    %v1029 = vpack.c.bf16 %v1022, %v1022
    %v1030 = vpack.c.bf16 %v1024, %v1024
    %v1031 = vpack.c.bf16 %v1026, %v1026
    %v1032 = vpack.c.bf16 %v1028, %v1028
    %1033 = vst [vmem:[#allocation3 + $0x10] sm:$0xf] %v1029
    %1034 = vst [vmem:[#allocation3 + $0x14] sm:$0xf] %v1030
    %1035 = vst [vmem:[#allocation3 + $0x18] sm:$0xf] %v1031
    %1036 = vst [vmem:[#allocation3 + $0x1c] sm:$0xf] %v1032
    %1037 = vrot.lane.b32.xlu0 %v1002, 126
    %v1038 = vpop.permute.xlu0 %1037
    %1039 = vrot.lane.b32.xlu0 %v1005, 126
    %v1040 = vpop.permute.xlu0 %1039
    %1041 = vrot.lane.b32.xlu0 %v1008, 126
    %v1042 = vpop.permute.xlu0 %1041
    %1043 = vrot.lane.b32.xlu0 %v1011, 126
    %v1044 = vpop.permute.xlu0 %1043
    %v1045 = vpack.c.bf16 %v1038, %v1038
    %v1046 = vpack.c.bf16 %v1040, %v1040
    %v1047 = vpack.c.bf16 %v1042, %v1042
    %v1048 = vpack.c.bf16 %v1044, %v1044
    %1049 = vst [vmem:[#allocation3 + $0x20] sm:$0xf] %v1045
    %1050 = vst [vmem:[#allocation3 + $0x24] sm:$0xf] %v1046
    %1051 = vst [vmem:[#allocation3 + $0x28] sm:$0xf] %v1047
    %1052 = vst [vmem:[#allocation3 + $0x2c] sm:$0xf] %v1048
    %1053 = vrot.lane.b32.xlu0 %v1002, 125
    %v1054 = vpop.permute.xlu0 %1053
    %1055 = vrot.lane.b32.xlu0 %v1005, 125
    %v1056 = vpop.permute.xlu0 %1055
    %1057 = vrot.lane.b32.xlu0 %v1008, 125
    %v1058 = vpop.permute.xlu0 %1057
    %1059 = vrot.lane.b32.xlu0 %v1011, 125
    %v1060 = vpop.permute.xlu0 %1059
    %v1061 = vpack.c.bf16 %v1054, %v1054
    %v1062 = vpack.c.bf16 %v1056, %v1056
    %v1063 = vpack.c.bf16 %v1058, %v1058
    %v1064 = vpack.c.bf16 %v1060, %v1060
    %1065 = vst [vmem:[#allocation3 + $0x30] sm:$0xf] %v1061
    %1066 = vst [vmem:[#allocation3 + $0x34] sm:$0xf] %v1062
    %1067 = vst [vmem:[#allocation3 + $0x38] sm:$0xf] %v1063
    %1068 = vst [vmem:[#allocation3 + $0x3c] sm:$0xf] %v1064
    %1069 = vrot.lane.b32.xlu0 %v1002, 124
    %v1070 = vpop.permute.xlu0 %1069
    %1071 = vrot.lane.b32.xlu0 %v1005, 124
    %v1072 = vpop.permute.xlu0 %1071
    %1073 = vrot.lane.b32.xlu0 %v1008, 124
    %v1074 = vpop.permute.xlu0 %1073
    %1075 = vrot.lane.b32.xlu0 %v1011, 124
    %v1076 = vpop.permute.xlu0 %1075
    %v1077 = vpack.c.bf16 %v1070, %v1070
    %v1078 = vpack.c.bf16 %v1072, %v1072
    %v1079 = vpack.c.bf16 %v1074, %v1074
    %v1080 = vpack.c.bf16 %v1076, %v1076
    %1081 = vst [vmem:[#allocation3 + $0x40] sm:$0xf] %v1077
    %1082 = vst [vmem:[#allocation3 + $0x44] sm:$0xf] %v1078
    %1083 = vst [vmem:[#allocation3 + $0x48] sm:$0xf] %v1079
    %1084 = vst [vmem:[#allocation3 + $0x4c] sm:$0xf] %v1080
    %1085 = vrot.lane.b32.xlu0 %v1002, 123
    %v1086 = vpop.permute.xlu0 %1085
    %1087 = vrot.lane.b32.xlu0 %v1005, 123
    %v1088 = vpop.permute.xlu0 %1087
    %1089 = vrot.lane.b32.xlu0 %v1008, 123
    %v1090 = vpop.permute.xlu0 %1089
    %1091 = vrot.lane.b32.xlu0 %v1011, 123
    %v1092 = vpop.permute.xlu0 %1091
    %v1093 = vpack.c.bf16 %v1086, %v1086
    %v1094 = vpack.c.bf16 %v1088, %v1088
    %v1095 = vpack.c.bf16 %v1090, %v1090
    %v1096 = vpack.c.bf16 %v1092, %v1092
    %1097 = vst [vmem:[#allocation3 + $0x50] sm:$0xf] %v1093
    %1098 = vst [vmem:[#allocation3 + $0x54] sm:$0xf] %v1094
    %1099 = vst [vmem:[#allocation3 + $0x58] sm:$0xf] %v1095
    %1100 = vst [vmem:[#allocation3 + $0x5c] sm:$0xf] %v1096
    %1101 = vrot.lane.b32.xlu0 %v1002, 122
    %v1102 = vpop.permute.xlu0 %1101
    %1103 = vrot.lane.b32.xlu0 %v1005, 122
    %v1104 = vpop.permute.xlu0 %1103
    %1105 = vrot.lane.b32.xlu0 %v1008, 122
    %v1106 = vpop.permute.xlu0 %1105
    %1107 = vrot.lane.b32.xlu0 %v1011, 122
    %v1108 = vpop.permute.xlu0 %1107
    %v1109 = vpack.c.bf16 %v1102, %v1102
    %v1110 = vpack.c.bf16 %v1104, %v1104
    %v1111 = vpack.c.bf16 %v1106, %v1106
    %v1112 = vpack.c.bf16 %v1108, %v1108
    %1113 = vst [vmem:[#allocation3 + $0x60] sm:$0xf] %v1109
    %1114 = vst [vmem:[#allocation3 + $0x64] sm:$0xf] %v1110
    %1115 = vst [vmem:[#allocation3 + $0x68] sm:$0xf] %v1111
    %1116 = vst [vmem:[#allocation3 + $0x6c] sm:$0xf] %v1112
    %1117 = vrot.lane.b32.xlu0 %v1002, 121
    %v1118 = vpop.permute.xlu0 %1117
    %1119 = vrot.lane.b32.xlu0 %v1005, 121
    %v1120 = vpop.permute.xlu0 %1119
    %1121 = vrot.lane.b32.xlu0 %v1008, 121
    %v1122 = vpop.permute.xlu0 %1121
    %1123 = vrot.lane.b32.xlu0 %v1011, 121
    %v1124 = vpop.permute.xlu0 %1123
    %v1125 = vpack.c.bf16 %v1118, %v1118
    %v1126 = vpack.c.bf16 %v1120, %v1120
    %v1127 = vpack.c.bf16 %v1122, %v1122
    %v1128 = vpack.c.bf16 %v1124, %v1124
    %1129 = vst [vmem:[#allocation3 + $0x70] sm:$0xf] %v1125
    %1130 = vst [vmem:[#allocation3 + $0x74] sm:$0xf] %v1126
    %1131 = vst [vmem:[#allocation3 + $0x78] sm:$0xf] %v1127
    %1132 = vst [vmem:[#allocation3 + $0x7c] sm:$0xf] %v1128
    %1133 = vrot.lane.b32.xlu0 %v1002, 120
    %v1134 = vpop.permute.xlu0 %1133
    %1135 = vrot.lane.b32.xlu0 %v1005, 120
    %v1136 = vpop.permute.xlu0 %1135
    %1137 = vrot.lane.b32.xlu0 %v1008, 120
    %v1138 = vpop.permute.xlu0 %1137
    %1139 = vrot.lane.b32.xlu0 %v1011, 120
    %v1140 = vpop.permute.xlu0 %1139
    %v1141 = vpack.c.bf16 %v1134, %v1134
    %v1142 = vpack.c.bf16 %v1136, %v1136
    %v1143 = vpack.c.bf16 %v1138, %v1138
    %v1144 = vpack.c.bf16 %v1140, %v1140
    %1145 = vst [vmem:[#allocation3 + $0x80] sm:$0xf] %v1141
    %1146 = vst [vmem:[#allocation3 + $0x84] sm:$0xf] %v1142
    %1147 = vst [vmem:[#allocation3 + $0x88] sm:$0xf] %v1143
    %1148 = vst [vmem:[#allocation3 + $0x8c] sm:$0xf] %v1144
    %1149 = vrot.lane.b32.xlu0 %v1002, 119
    %v1150 = vpop.permute.xlu0 %1149
    %1151 = vrot.lane.b32.xlu0 %v1005, 119
    %v1152 = vpop.permute.xlu0 %1151
    %1153 = vrot.lane.b32.xlu0 %v1008, 119
    %v1154 = vpop.permute.xlu0 %1153
    %1155 = vrot.lane.b32.xlu0 %v1011, 119
    %v1156 = vpop.permute.xlu0 %1155
    %v1157 = vpack.c.bf16 %v1150, %v1150
    %v1158 = vpack.c.bf16 %v1152, %v1152
    %v1159 = vpack.c.bf16 %v1154, %v1154
    %v1160 = vpack.c.bf16 %v1156, %v1156
    %1161 = vst [vmem:[#allocation3 + $0x90] sm:$0xf] %v1157
    %1162 = vst [vmem:[#allocation3 + $0x94] sm:$0xf] %v1158
    %1163 = vst [vmem:[#allocation3 + $0x98] sm:$0xf] %v1159
    %1164 = vst [vmem:[#allocation3 + $0x9c] sm:$0xf] %v1160
    %1165 = vrot.lane.b32.xlu0 %v1002, 118
    %v1166 = vpop.permute.xlu0 %1165
    %1167 = vrot.lane.b32.xlu0 %v1005, 118
    %v1168 = vpop.permute.xlu0 %1167
    %1169 = vrot.lane.b32.xlu0 %v1008, 118
    %v1170 = vpop.permute.xlu0 %1169
    %1171 = vrot.lane.b32.xlu0 %v1011, 118
    %v1172 = vpop.permute.xlu0 %1171
    %v1173 = vpack.c.bf16 %v1166, %v1166
    %v1174 = vpack.c.bf16 %v1168, %v1168
    %v1175 = vpack.c.bf16 %v1170, %v1170
    %v1176 = vpack.c.bf16 %v1172, %v1172
    %1177 = vst [vmem:[#allocation3 + $0xa0] sm:$0xf] %v1173
    %1178 = vst [vmem:[#allocation3 + $0xa4] sm:$0xf] %v1174
    %1179 = vst [vmem:[#allocation3 + $0xa8] sm:$0xf] %v1175
    %1180 = vst [vmem:[#allocation3 + $0xac] sm:$0xf] %v1176
    %1181 = vrot.lane.b32.xlu0 %v1002, 117
    %v1182 = vpop.permute.xlu0 %1181
    %1183 = vrot.lane.b32.xlu0 %v1005, 117
    %v1184 = vpop.permute.xlu0 %1183
    %1185 = vrot.lane.b32.xlu0 %v1008, 117
    %v1186 = vpop.permute.xlu0 %1185
    %1187 = vrot.lane.b32.xlu0 %v1011, 117
    %v1188 = vpop.permute.xlu0 %1187
    %v1189 = vpack.c.bf16 %v1182, %v1182
    %v1190 = vpack.c.bf16 %v1184, %v1184
    %v1191 = vpack.c.bf16 %v1186, %v1186
    %v1192 = vpack.c.bf16 %v1188, %v1188
    %1193 = vst [vmem:[#allocation3 + $0xb0] sm:$0xf] %v1189
    %1194 = vst [vmem:[#allocation3 + $0xb4] sm:$0xf] %v1190
    %1195 = vst [vmem:[#allocation3 + $0xb8] sm:$0xf] %v1191
    %1196 = vst [vmem:[#allocation3 + $0xbc] sm:$0xf] %v1192
    %1197 = vrot.lane.b32.xlu0 %v1002, 116
    %v1198 = vpop.permute.xlu0 %1197
    %1199 = vrot.lane.b32.xlu0 %v1005, 116
    %v1200 = vpop.permute.xlu0 %1199
    %1201 = vrot.lane.b32.xlu0 %v1008, 116
    %v1202 = vpop.permute.xlu0 %1201
    %1203 = vrot.lane.b32.xlu0 %v1011, 116
    %v1204 = vpop.permute.xlu0 %1203
    %v1205 = vpack.c.bf16 %v1198, %v1198
    %v1206 = vpack.c.bf16 %v1200, %v1200
    %v1207 = vpack.c.bf16 %v1202, %v1202
    %v1208 = vpack.c.bf16 %v1204, %v1204
    %1209 = vst [vmem:[#allocation3 + $0xc0] sm:$0xf] %v1205
    %1210 = vst [vmem:[#allocation3 + $0xc4] sm:$0xf] %v1206
    %1211 = vst [vmem:[#allocation3 + $0xc8] sm:$0xf] %v1207
    %1212 = vst [vmem:[#allocation3 + $0xcc] sm:$0xf] %v1208
    %1213 = vrot.lane.b32.xlu0 %v1002, 115
    %v1214 = vpop.permute.xlu0 %1213
    %1215 = vrot.lane.b32.xlu0 %v1005, 115
    %v1216 = vpop.permute.xlu0 %1215
    %1217 = vrot.lane.b32.xlu0 %v1008, 115
    %v1218 = vpop.permute.xlu0 %1217
    %1219 = vrot.lane.b32.xlu0 %v1011, 115
    %v1220 = vpop.permute.xlu0 %1219
    %v1221 = vpack.c.bf16 %v1214, %v1214
    %v1222 = vpack.c.bf16 %v1216, %v1216
    %v1223 = vpack.c.bf16 %v1218, %v1218
    %v1224 = vpack.c.bf16 %v1220, %v1220
    %1225 = vst [vmem:[#allocation3 + $0xd0] sm:$0xf] %v1221
    %1226 = vst [vmem:[#allocation3 + $0xd4] sm:$0xf] %v1222
    %1227 = vst [vmem:[#allocation3 + $0xd8] sm:$0xf] %v1223
    %1228 = vst [vmem:[#allocation3 + $0xdc] sm:$0xf] %v1224
    %1229 = vrot.lane.b32.xlu0 %v1002, 114
    %v1230 = vpop.permute.xlu0 %1229
    %1231 = vrot.lane.b32.xlu0 %v1005, 114
    %v1232 = vpop.permute.xlu0 %1231
    %1233 = vrot.lane.b32.xlu0 %v1008, 114
    %v1234 = vpop.permute.xlu0 %1233
    %1235 = vrot.lane.b32.xlu0 %v1011, 114
    %v1236 = vpop.permute.xlu0 %1235
    %v1237 = vpack.c.bf16 %v1230, %v1230
    %v1238 = vpack.c.bf16 %v1232, %v1232
    %v1239 = vpack.c.bf16 %v1234, %v1234
    %v1240 = vpack.c.bf16 %v1236, %v1236
    %1241 = vst [vmem:[#allocation3 + $0xe0] sm:$0xf] %v1237
    %1242 = vst [vmem:[#allocation3 + $0xe4] sm:$0xf] %v1238
    %1243 = vst [vmem:[#allocation3 + $0xe8] sm:$0xf] %v1239
    %1244 = vst [vmem:[#allocation3 + $0xec] sm:$0xf] %v1240
    %1245 = vrot.lane.b32.xlu0 %v1002, 113
    %v1246 = vpop.permute.xlu0 %1245
    %1247 = vrot.lane.b32.xlu0 %v1005, 113
    %v1248 = vpop.permute.xlu0 %1247
    %1249 = vrot.lane.b32.xlu0 %v1008, 113
    %v1250 = vpop.permute.xlu0 %1249
    %1251 = vrot.lane.b32.xlu0 %v1011, 113
    %v1252 = vpop.permute.xlu0 %1251
    %v1253 = vpack.c.bf16 %v1246, %v1246
    %v1254 = vpack.c.bf16 %v1248, %v1248
    %v1255 = vpack.c.bf16 %v1250, %v1250
    %v1256 = vpack.c.bf16 %v1252, %v1252
    %1257 = vst [vmem:[#allocation3 + $0xf0] sm:$0xf] %v1253
    %1258 = vst [vmem:[#allocation3 + $0xf4] sm:$0xf] %v1254
    %1259 = vst [vmem:[#allocation3 + $0xf8] sm:$0xf] %v1255
    %1260 = vst [vmem:[#allocation3 + $0xfc] sm:$0xf] %v1256
    %v1261 = vld [vmem:[%s3] sm:$0xff]
    %v1262 = vld [vmem:[%s3 + $0x8] sm:$0xff]
    %v1263 = vld [vmem:[%s3 + $0x10] sm:$0xff]
    %v1264 = vld [vmem:[%s3 + $0x18] sm:$0xff]
    %v1265 = vld [vmem:[%s3 + $0x20] sm:$0xff]
    %v1266 = vld [vmem:[%s3 + $0x28] sm:$0xff]
    %v1267 = vld [vmem:[%s3 + $0x30] sm:$0xff]
    %v1268 = vld [vmem:[%s3 + $0x38] sm:$0xff]
    %v1269 = vld [vmem:[#allocation3] sm:$0xf]
    %v1270 = vld [vmem:[#allocation3 + $0x4] sm:$0xf]
    %v1271 = vld [vmem:[#allocation3 + $0x8] sm:$0xf]
    %v1272 = vld [vmem:[#allocation3 + $0xc] sm:$0xf]
    %v1273 = vld [vmem:[#allocation3 + $0x10] sm:$0xf]
    %v1274 = vld [vmem:[#allocation3 + $0x14] sm:$0xf]
    %v1275 = vld [vmem:[#allocation3 + $0x18] sm:$0xf]
    %v1276 = vld [vmem:[#allocation3 + $0x1c] sm:$0xf]
    %v1277 = vld [vmem:[#allocation3 + $0x20] sm:$0xf]
    %v1278 = vld [vmem:[#allocation3 + $0x24] sm:$0xf]
    %v1279 = vld [vmem:[#allocation3 + $0x28] sm:$0xf]
    %v1280 = vld [vmem:[#allocation3 + $0x2c] sm:$0xf]
    %v1281 = vld [vmem:[#allocation3 + $0x30] sm:$0xf]
    %v1282 = vld [vmem:[#allocation3 + $0x34] sm:$0xf]
    %v1283 = vld [vmem:[#allocation3 + $0x38] sm:$0xf]
    %v1284 = vld [vmem:[#allocation3 + $0x3c] sm:$0xf]
    %v1285 = vld [vmem:[#allocation3 + $0x40] sm:$0xf]
    %v1286 = vld [vmem:[#allocation3 + $0x44] sm:$0xf]
    %v1287 = vld [vmem:[#allocation3 + $0x48] sm:$0xf]
    %v1288 = vld [vmem:[#allocation3 + $0x4c] sm:$0xf]
    %v1289 = vld [vmem:[#allocation3 + $0x50] sm:$0xf]
    %v1290 = vld [vmem:[#allocation3 + $0x54] sm:$0xf]
    %v1291 = vld [vmem:[#allocation3 + $0x58] sm:$0xf]
    %v1292 = vld [vmem:[#allocation3 + $0x5c] sm:$0xf]
    %v1293 = vld [vmem:[#allocation3 + $0x60] sm:$0xf]
    %v1294 = vld [vmem:[#allocation3 + $0x64] sm:$0xf]
    %v1295 = vld [vmem:[#allocation3 + $0x68] sm:$0xf]
    %v1296 = vld [vmem:[#allocation3 + $0x6c] sm:$0xf]
    %v1297 = vld [vmem:[#allocation3 + $0x70] sm:$0xf]
    %v1298 = vld [vmem:[#allocation3 + $0x74] sm:$0xf]
    %v1299 = vld [vmem:[#allocation3 + $0x78] sm:$0xf]
    %v1300 = vld [vmem:[#allocation3 + $0x7c] sm:$0xf]
    %v1301 = vld [vmem:[#allocation3 + $0x80] sm:$0xf]
    %v1302 = vld [vmem:[#allocation3 + $0x84] sm:$0xf]
    %v1303 = vld [vmem:[#allocation3 + $0x88] sm:$0xf]
    %v1304 = vld [vmem:[#allocation3 + $0x8c] sm:$0xf]
    %v1305 = vld [vmem:[#allocation3 + $0x90] sm:$0xf]
    %v1306 = vld [vmem:[#allocation3 + $0x94] sm:$0xf]
    %v1307 = vld [vmem:[#allocation3 + $0x98] sm:$0xf]
    %v1308 = vld [vmem:[#allocation3 + $0x9c] sm:$0xf]
    %v1309 = vld [vmem:[#allocation3 + $0xa0] sm:$0xf]
    %v1310 = vld [vmem:[#allocation3 + $0xa4] sm:$0xf]
    %v1311 = vld [vmem:[#allocation3 + $0xa8] sm:$0xf]
    %v1312 = vld [vmem:[#allocation3 + $0xac] sm:$0xf]
    %v1313 = vld [vmem:[#allocation3 + $0xb0] sm:$0xf]
    %v1314 = vld [vmem:[#allocation3 + $0xb4] sm:$0xf]
    %v1315 = vld [vmem:[#allocation3 + $0xb8] sm:$0xf]
    %v1316 = vld [vmem:[#allocation3 + $0xbc] sm:$0xf]
    %v1317 = vld [vmem:[#allocation3 + $0xc0] sm:$0xf]
    %v1318 = vld [vmem:[#allocation3 + $0xc4] sm:$0xf]
    %v1319 = vld [vmem:[#allocation3 + $0xc8] sm:$0xf]
    %v1320 = vld [vmem:[#allocation3 + $0xcc] sm:$0xf]
    %v1321 = vld [vmem:[#allocation3 + $0xd0] sm:$0xf]
    %v1322 = vld [vmem:[#allocation3 + $0xd4] sm:$0xf]
    %v1323 = vld [vmem:[#allocation3 + $0xd8] sm:$0xf]
    %v1324 = vld [vmem:[#allocation3 + $0xdc] sm:$0xf]
    %v1325 = vld [vmem:[#allocation3 + $0xe0] sm:$0xf]
    %v1326 = vld [vmem:[#allocation3 + $0xe4] sm:$0xf]
    %v1327 = vld [vmem:[#allocation3 + $0xe8] sm:$0xf]
    %v1328 = vld [vmem:[#allocation3 + $0xec] sm:$0xf]
    %v1329 = vld [vmem:[#allocation3 + $0xf0] sm:$0xf]
    %v1330 = vld [vmem:[#allocation3 + $0xf4] sm:$0xf]
    %v1331 = vld [vmem:[#allocation3 + $0xf8] sm:$0xf]
    %v1332 = vld [vmem:[#allocation3 + $0xfc] sm:$0xf]
    %v1333 = vld [vmem:[%s5] sm:$0xff]
    %v1334 = vld [vmem:[%s5 + $0x8] sm:$0xff]
    %v1335 = vld [vmem:[%s5 + $0x10] sm:$0xff]
    %v1336 = vld [vmem:[%s5 + $0x18] sm:$0xff]
    %1338 = vset.pattern.permute.xlu0 1
    %1339 = vperm.xlu0 %1338, %v1333
    %v1340 = vpop.permute.xlu0 %1339
    %1343 = vset.pattern.permute.xlu0 1
    %1344 = vperm.xlu0 %1343, %v1334
    %v1345 = vpop.permute.xlu0 %1344
    %1348 = vset.pattern.permute.xlu0 1
    %1349 = vperm.xlu0 %1348, %v1335
    %v1350 = vpop.permute.xlu0 %1349
    %1353 = vset.pattern.permute.xlu0 1
    %1354 = vperm.xlu0 %1353, %v1336
    %v1355 = vpop.permute.xlu0 %1354
    %v1365 = vunpack.c.l.b16 %v1261
    %v1366 = vunpack.c.h.b16 %v1261
    %v1367 = vunpack.c.l.b16 %v1262
    %v1368 = vunpack.c.h.b16 %v1262
    %v1369 = vunpack.c.l.b16 %v1263
    %v1370 = vunpack.c.h.b16 %v1263
    %v1371 = vunpack.c.l.b16 %v1264
    %v1372 = vunpack.c.h.b16 %v1264
    %v1373 = vunpack.c.l.b16 %v1265
    %v1374 = vunpack.c.h.b16 %v1265
    %v1375 = vunpack.c.l.b16 %v1266
    %v1376 = vunpack.c.h.b16 %v1266
    %v1377 = vunpack.c.l.b16 %v1267
    %v1378 = vunpack.c.h.b16 %v1267
    %v1379 = vunpack.c.l.b16 %v1268
    %v1380 = vunpack.c.h.b16 %v1268
    %v1381 = vpack.c.b16 %v1369, %v1365
    %v1382 = vpack.c.b16 %v1370, %v1366
    %v1383 = vpack.c.b16 %v1371, %v1367
    %v1384 = vpack.c.b16 %v1372, %v1368
    %v1385 = vpack.c.b16 %v1377, %v1373
    %v1386 = vpack.c.b16 %v1378, %v1374
    %v1387 = vpack.c.b16 %v1379, %v1375
    %v1388 = vpack.c.b16 %v1380, %v1376
    %v1461 = vunpack.c.l.b16 %v1269
    %v1462 = vunpack.c.l.b16 %v1270
    %v1463 = vunpack.c.l.b16 %v1271
    %v1464 = vunpack.c.l.b16 %v1272
    %v1465 = vunpack.c.l.b16 %v1273
    %v1466 = vunpack.c.l.b16 %v1274
    %v1467 = vunpack.c.l.b16 %v1275
    %v1468 = vunpack.c.l.b16 %v1276
    %v1469 = vunpack.c.l.b16 %v1277
    %v1470 = vunpack.c.l.b16 %v1278
    %v1471 = vunpack.c.l.b16 %v1279
    %v1472 = vunpack.c.l.b16 %v1280
    %v1473 = vunpack.c.l.b16 %v1281
    %v1474 = vunpack.c.l.b16 %v1282
    %v1475 = vunpack.c.l.b16 %v1283
    %v1476 = vunpack.c.l.b16 %v1284
    %v1477 = vunpack.c.l.b16 %v1285
    %v1478 = vunpack.c.l.b16 %v1286
    %v1479 = vunpack.c.l.b16 %v1287
    %v1480 = vunpack.c.l.b16 %v1288
    %v1481 = vunpack.c.l.b16 %v1289
    %v1482 = vunpack.c.l.b16 %v1290
    %v1483 = vunpack.c.l.b16 %v1291
    %v1484 = vunpack.c.l.b16 %v1292
    %v1485 = vunpack.c.l.b16 %v1293
    %v1486 = vunpack.c.l.b16 %v1294
    %v1487 = vunpack.c.l.b16 %v1295
    %v1488 = vunpack.c.l.b16 %v1296
    %v1489 = vunpack.c.l.b16 %v1297
    %v1490 = vunpack.c.l.b16 %v1298
    %v1491 = vunpack.c.l.b16 %v1299
    %v1492 = vunpack.c.l.b16 %v1300
    %v1493 = vunpack.c.l.b16 %v1301
    %v1494 = vunpack.c.l.b16 %v1302
    %v1495 = vunpack.c.l.b16 %v1303
    %v1496 = vunpack.c.l.b16 %v1304
    %v1497 = vunpack.c.l.b16 %v1305
    %v1498 = vunpack.c.l.b16 %v1306
    %v1499 = vunpack.c.l.b16 %v1307
    %v1500 = vunpack.c.l.b16 %v1308
    %v1501 = vunpack.c.l.b16 %v1309
    %v1502 = vunpack.c.l.b16 %v1310
    %v1503 = vunpack.c.l.b16 %v1311
    %v1504 = vunpack.c.l.b16 %v1312
    %v1505 = vunpack.c.l.b16 %v1313
    %v1506 = vunpack.c.l.b16 %v1314
    %v1507 = vunpack.c.l.b16 %v1315
    %v1508 = vunpack.c.l.b16 %v1316
    %v1509 = vunpack.c.l.b16 %v1317
    %v1510 = vunpack.c.l.b16 %v1318
    %v1511 = vunpack.c.l.b16 %v1319
    %v1512 = vunpack.c.l.b16 %v1320
    %v1513 = vunpack.c.l.b16 %v1321
    %v1514 = vunpack.c.l.b16 %v1322
    %v1515 = vunpack.c.l.b16 %v1323
    %v1516 = vunpack.c.l.b16 %v1324
    %v1517 = vunpack.c.l.b16 %v1325
    %v1518 = vunpack.c.l.b16 %v1326
    %v1519 = vunpack.c.l.b16 %v1327
    %v1520 = vunpack.c.l.b16 %v1328
    %v1521 = vunpack.c.l.b16 %v1329
    %v1522 = vunpack.c.l.b16 %v1330
    %v1523 = vunpack.c.l.b16 %v1331
    %v1524 = vunpack.c.l.b16 %v1332
    %v1525 = vpack.c.b16 %v1462, %v1461
    %v1526 = vpack.c.b16 %v1464, %v1463
    %v1527 = vpack.c.b16 %v1466, %v1465
    %v1528 = vpack.c.b16 %v1468, %v1467
    %v1529 = vpack.c.b16 %v1470, %v1469
    %v1530 = vpack.c.b16 %v1472, %v1471
    %v1531 = vpack.c.b16 %v1474, %v1473
    %v1532 = vpack.c.b16 %v1476, %v1475
    %v1533 = vpack.c.b16 %v1478, %v1477
    %v1534 = vpack.c.b16 %v1480, %v1479
    %v1535 = vpack.c.b16 %v1482, %v1481
    %v1536 = vpack.c.b16 %v1484, %v1483
    %v1537 = vpack.c.b16 %v1486, %v1485
    %v1538 = vpack.c.b16 %v1488, %v1487
    %v1539 = vpack.c.b16 %v1490, %v1489
    %v1540 = vpack.c.b16 %v1492, %v1491
    %v1541 = vpack.c.b16 %v1494, %v1493
    %v1542 = vpack.c.b16 %v1496, %v1495
    %v1543 = vpack.c.b16 %v1498, %v1497
    %v1544 = vpack.c.b16 %v1500, %v1499
    %v1545 = vpack.c.b16 %v1502, %v1501
    %v1546 = vpack.c.b16 %v1504, %v1503
    %v1547 = vpack.c.b16 %v1506, %v1505
    %v1548 = vpack.c.b16 %v1508, %v1507
    %v1549 = vpack.c.b16 %v1510, %v1509
    %v1550 = vpack.c.b16 %v1512, %v1511
    %v1551 = vpack.c.b16 %v1514, %v1513
    %v1552 = vpack.c.b16 %v1516, %v1515
    %v1553 = vpack.c.b16 %v1518, %v1517
    %v1554 = vpack.c.b16 %v1520, %v1519
    %v1555 = vpack.c.b16 %v1522, %v1521
    %v1556 = vpack.c.b16 %v1524, %v1523
    %1589 = vmatpush.bf16.msra.mxu0 %v1532
    %1590 = vmatpush.bf16.msra.mxu0 %v1531
    %1591 = vmatpush.bf16.msra.mxu0 %v1530
    %1592 = vmatpush.bf16.msra.mxu0 %v1529
    %1593 = vmatpush.bf16.msra.mxu0 %v1528
    %1594 = vmatpush.bf16.msra.mxu0 %v1527
    %1595 = vmatpush.bf16.msra.mxu0 %v1526
    %1596 = vmatpush.bf16.msra.mxu0 %v1525
    %1597 = vmatmul.bf16.gmra.mxu0 %v1381
    %v1598 = vpop.f32.mrf.mxu0
    %v1599 = vadd.f32 %v1340, %v1598
    %v1600 = vpop.f32.mrf.mxu0
    %v1601 = vadd.f32 %v1345, %v1600
    %1602 = vmatmul.bf16.gmra.mxu0 %v1385
    %v1603 = vpop.f32.mrf.mxu0
    %v1604 = vadd.f32 %v1350, %v1603
    %v1605 = vpop.f32.mrf.mxu0
    %v1606 = vadd.f32 %v1355, %v1605
    %1607 = vdwg.mxu0
    %1608 = vmatpush.bf16.msra.mxu0 %v1540
    %1609 = vmatpush.bf16.msra.mxu0 %v1539
    %1610 = vmatpush.bf16.msra.mxu0 %v1538
    %1611 = vmatpush.bf16.msra.mxu0 %v1537
    %1612 = vmatpush.bf16.msra.mxu0 %v1536
    %1613 = vmatpush.bf16.msra.mxu0 %v1535
    %1614 = vmatpush.bf16.msra.mxu0 %v1534
    %1615 = vmatpush.bf16.msra.mxu0 %v1533
    %1616 = vmatmul.bf16.gmra.mxu0 %v1382
    %v1617 = vpop.f32.mrf.mxu0
    %v1618 = vadd.f32 %v1599, %v1617
    %v1619 = vpop.f32.mrf.mxu0
    %v1620 = vadd.f32 %v1601, %v1619
    %1621 = vmatmul.bf16.gmra.mxu0 %v1386
    %v1622 = vpop.f32.mrf.mxu0
    %v1623 = vadd.f32 %v1604, %v1622
    %v1624 = vpop.f32.mrf.mxu0
    %v1625 = vadd.f32 %v1606, %v1624
    %1626 = vdwg.mxu0
    %1627 = vmatpush.bf16.msra.mxu0 %v1548
    %1628 = vmatpush.bf16.msra.mxu0 %v1547
    %1629 = vmatpush.bf16.msra.mxu0 %v1546
    %1630 = vmatpush.bf16.msra.mxu0 %v1545
    %1631 = vmatpush.bf16.msra.mxu0 %v1544
    %1632 = vmatpush.bf16.msra.mxu0 %v1543
    %1633 = vmatpush.bf16.msra.mxu0 %v1542
    %1634 = vmatpush.bf16.msra.mxu0 %v1541
    %1635 = vmatmul.bf16.gmra.mxu0 %v1383
    %v1636 = vpop.f32.mrf.mxu0
    %v1637 = vadd.f32 %v1618, %v1636
    %v1638 = vpop.f32.mrf.mxu0
    %v1639 = vadd.f32 %v1620, %v1638
    %1640 = vmatmul.bf16.gmra.mxu0 %v1387
    %v1641 = vpop.f32.mrf.mxu0
    %v1642 = vadd.f32 %v1623, %v1641
    %v1643 = vpop.f32.mrf.mxu0
    %v1644 = vadd.f32 %v1625, %v1643
    %1645 = vdwg.mxu0
    %1646 = vmatpush.bf16.msra.mxu0 %v1556
    %1647 = vmatpush.bf16.msra.mxu0 %v1555
    %1648 = vmatpush.bf16.msra.mxu0 %v1554
    %1649 = vmatpush.bf16.msra.mxu0 %v1553
    %1650 = vmatpush.bf16.msra.mxu0 %v1552
    %1651 = vmatpush.bf16.msra.mxu0 %v1551
    %1652 = vmatpush.bf16.msra.mxu0 %v1550
    %1653 = vmatpush.bf16.msra.mxu0 %v1549
    %1654 = vmatmul.bf16.gmra.mxu0 %v1384
    %v1655 = vpop.f32.mrf.mxu0
    %v1656 = vadd.f32 %v1637, %v1655
    %v1657 = vpop.f32.mrf.mxu0
    %v1658 = vadd.f32 %v1639, %v1657
    %1659 = vmatmul.bf16.gmra.mxu0 %v1388
    %v1660 = vpop.f32.mrf.mxu0
    %v1661 = vadd.f32 %v1642, %v1660
    %v1662 = vpop.f32.mrf.mxu0
    %v1663 = vadd.f32 %v1644, %v1662
    %1664 = vdwg.mxu0
    %vm1665 = vcmp.gt.f32.partialorder %v1656, 0.0
    %vm1666 = vcmp.gt.f32.partialorder %v1658, 0.0
    %vm1667 = vcmp.gt.f32.partialorder %v1661, 0.0
    %vm1668 = vcmp.gt.f32.partialorder %v1663, 0.0
    %v1669 = vmin.f32 %v1656, 0.0
    %v1670 = vmin.f32 %v1658, 0.0
    %v1671 = vmin.f32 %v1661, 0.0
    %v1672 = vmin.f32 %v1663, 0.0
    %v1673 = vmul.f32 %v1669, 1.442695
    %v1674 = vpow.pop %v1673
    %v1675 = vmul.f32 %v1670, 1.442695
    %v1676 = vpow.pop %v1675
    %v1677 = vmul.f32 %v1671, 1.442695
    %v1678 = vpow.pop %v1677
    %v1679 = vmul.f32 %v1672, 1.442695
    %v1680 = vpow.pop %v1679
    %v1681 = vsub.f32 %v1674, 1.0
    %v1682 = vsub.f32 %v1676, 1.0
    %v1683 = vsub.f32 %v1678, 1.0
    %v1684 = vsub.f32 %v1680, 1.0
    %v1685 = vsel %vm1665, %v1656, %v1681
    %v1686 = vsel %vm1666, %v1658, %v1682
    %v1687 = vsel %vm1667, %v1661, %v1683
    %v1688 = vsel %vm1668, %v1663, %v1684
    %v1689 = vld [vmem:[%s4] sm:$0xff]
    %v1690 = vld [vmem:[%s4 + $0x8] sm:$0xff]
    %v1691 = vld [vmem:[%s4 + $0x10] sm:$0xff]
    %v1692 = vld [vmem:[%s4 + $0x18] sm:$0xff]
    %v1693 = vld [vmem:[%s4 + $0x20] sm:$0xff]
    %v1694 = vld [vmem:[%s4 + $0x28] sm:$0xff]
    %v1695 = vld [vmem:[%s4 + $0x30] sm:$0xff]
    %v1696 = vld [vmem:[%s4 + $0x38] sm:$0xff]
    %v1697 = vld [vmem:[%s4 + $0x40] sm:$0xff]
    %v1698 = vld [vmem:[%s4 + $0x48] sm:$0xff]
    %v1699 = vld [vmem:[%s4 + $0x50] sm:$0xff]
    %v1700 = vld [vmem:[%s4 + $0x58] sm:$0xff]
    %v1701 = vld [vmem:[%s4 + $0x60] sm:$0xff]
    %v1702 = vld [vmem:[%s4 + $0x68] sm:$0xff]
    %v1703 = vld [vmem:[%s4 + $0x70] sm:$0xff]
    %v1704 = vld [vmem:[%s4 + $0x78] sm:$0xff]
    %v1705 = vld [vmem:[%s4 + $0x80] sm:$0xff]
    %v1706 = vld [vmem:[%s4 + $0x88] sm:$0xff]
    %v1707 = vld [vmem:[%s4 + $0x90] sm:$0xff]
    %v1708 = vld [vmem:[%s4 + $0x98] sm:$0xff]
    %1709 = vmatpush.msra.mxu0 %v1704
    %1710 = vmatpush.msra.mxu0 %v1703
    %1711 = vmatpush.msra.mxu0 %v1702
    %1712 = vmatpush.msra.mxu0 %v1701
    %1713 = vmatpush.msra.mxu0 %v1700
    %1714 = vmatpush.msra.mxu0 %v1699
    %1715 = vmatpush.msra.mxu0 %v1698
    %1716 = vmatpush.msra.mxu0 %v1697
    %1717 = vmatpush.msra.mxu0 %v1696
    %1718 = vmatpush.msra.mxu0 %v1695
    %1719 = vmatpush.msra.mxu0 %v1694
    %1720 = vmatpush.msra.mxu0 %v1693
    %1721 = vmatpush.msra.mxu0 %v1692
    %1722 = vmatpush.msra.mxu0 %v1691
    %1723 = vmatpush.msra.mxu0 %v1690
    %1724 = vmatpush.msra.mxu0 %v1689
    %1725 = vmatmul.f32.gmra.mxu0 %v1685
    %v1726 = vpop.f32.mrf.mxu0
    %v1727 = vadd.f32 0.0, %v1726
    %1728 = vmatmul.f32.gmra.mxu0 %v1686
    %v1729 = vpop.f32.mrf.mxu0
    %v1730 = vadd.f32 0.0, %v1729
    %1731 = vmatmul.f32.gmra.mxu0 %v1687
    %v1732 = vpop.f32.mrf.mxu0
    %v1733 = vadd.f32 0.0, %v1732
    %1734 = vmatmul.f32.gmra.mxu0 %v1688
    %v1735 = vpop.f32.mrf.mxu0
    %v1736 = vadd.f32 0.0, %v1735
    %1737 = vdwg.mxu0
    %v1738 = vmul.f32 %v1727, %v1705
    %v1739 = vmul.f32 %v1730, %v1706
    %v1740 = vmul.f32 %v1733, %v1707
    %v1741 = vmul.f32 %v1736, %v1708
    %v1742 = vld [vmem:[%s6] sm:$0xff]
    %v1743 = vld [vmem:[%s6 + $0x8] sm:$0xff]
    %v1744 = vld [vmem:[%s6 + $0x10] sm:$0xff]
    %v1745 = vld [vmem:[%s6 + $0x18] sm:$0xff]
    %v1746 = vld [vmem:[%s6 + $0x20] sm:$0xff]
    %v1747 = vld [vmem:[%s6 + $0x28] sm:$0xff]
    %vm1748 = vcmask 392192
    %v1750 = vsel %vm1748, %v1738, 0
    %v1753 = vsel %vm1748, %v1739, 0
    %v1756 = vsel %vm1748, %v1740, 0
    %v1759 = vsel %vm1748, %v1741, 0
    %1761 = vmatpush.msra.mxu0 0.0
    %1762 = vmatpush.msra.mxu0 0.0
    %1763 = vmatpush.msra.mxu0 0.0
    %1764 = vmatpush.msra.mxu0 0.0
    %1765 = vmatpush.msra.mxu0 0.0
    %1766 = vmatpush.msra.mxu0 0.0
    %1767 = vmatpush.msra.mxu0 0.0
    %1768 = vmatpush.msra.mxu0 0.0
    %1769 = vmatpush.msra.mxu0 0.0
    %1770 = vmatpush.msra.mxu0 0.0
    %1771 = vmatpush.msra.mxu0 %v1747
    %1772 = vmatpush.msra.mxu0 %v1746
    %1773 = vmatpush.msra.mxu0 %v1745
    %1774 = vmatpush.msra.mxu0 %v1744
    %1775 = vmatpush.msra.mxu0 %v1743
    %1776 = vmatpush.msra.mxu0 %v1742
    %1777 = vmatmul.f32.gmra.mxu0 %v1750
    %v1778 = vpop.f32.mrf.mxu0
    %v1779 = vadd.f32 0.0, %v1778
    %1780 = vmatmul.f32.gmra.mxu0 %v1753
    %v1781 = vpop.f32.mrf.mxu0
    %v1782 = vadd.f32 0.0, %v1781
    %1783 = vmatmul.f32.gmra.mxu0 %v1756
    %v1784 = vpop.f32.mrf.mxu0
    %v1785 = vadd.f32 0.0, %v1784
    %1786 = vmatmul.f32.gmra.mxu0 %v1759
    %v1787 = vpop.f32.mrf.mxu0
    %v1788 = vadd.f32 0.0, %v1787
    %1789 = vdwg.mxu0
    %v1790 = vld [vmem:[%s7] sm:$0x3]
    %v1791 = vld [vmem:[%s6 + $0x30] sm:$0x1]
    %v1792 = vperm.slane %v1791, 0
    %vm1793 = vcmask 261120
    %v1795 = vsel %vm1793, %v1790, 0
    %1797 = vmatpush.msra.mxu0 0.0
    %1798 = vmatpush.msra.mxu0 0.0
    %1799 = vmatpush.msra.mxu0 0.0
    %1800 = vmatpush.msra.mxu0 0.0
    %1801 = vmatpush.msra.mxu0 0.0
    %1802 = vmatpush.msra.mxu0 0.0
    %1803 = vmatpush.msra.mxu0 0.0
    %1804 = vmatpush.msra.mxu0 0.0
    %1805 = vmatpush.msra.mxu0 0.0
    %1806 = vmatpush.msra.mxu0 0.0
    %1807 = vmatpush.msra.mxu0 0.0
    %1808 = vmatpush.msra.mxu0 0.0
    %1809 = vmatpush.msra.mxu0 %v1788
    %1810 = vmatpush.msra.mxu0 %v1785
    %1811 = vmatpush.msra.mxu0 %v1782
    %1812 = vmatpush.msra.mxu0 %v1779
    %1813 = vmatmul.f32.gmra.mxu0 %v1795
    %v1814 = vpop.f32.mrf.mxu0
    %v1815 = vadd.f32 %v1792, %v1814
    %1816 = vdwg.mxu0
    %vm1817 = vcmask 17408
    %1818 = vst.msk [vmem:[#allocation4] sm:$0x3] %vm1817, %v1815
    // Predicated region
    $region34: #{cnn_forward.1} parent=1 // pred_check
      _
    $region35: #{cnn_forward.1} parent=1 // pred_check_branch
      %1820 = sbr.rel (0) target = $region37
    $region36: #{cnn_forward.1} parent=1 // pred_region
      %1822 = vsyncadd [#allocation5], 0
      %s1824 = sshll.u32 [#allocation4], 4
      %s1825 = int_to_ptr.vmem [resolvable:$true] %s1824
      %s1826 = sshll.u32 %s8, 4
      %s1827 = int_to_ptr.hbm [resolvable:$true] %s1826
      %1829 = dma.vmem_to_hbm [thread:$0]  %s1825, 32, %s1827, [#allocation5]
    $region37: #{cnn_forward.1} parent=1 // pred_fallthru
      _
    // Predicated region
    $region38: #{cnn_forward.1} parent=1 // pred_check
      _
    $region39: #{cnn_forward.1} parent=1 // pred_check_branch
      %1831 = sbr.rel (0) target = $region41
    $region40: #{cnn_forward.1} parent=1 // pred_region
      %1833 = dma.done [#allocation5], 32
    $region41: #{cnn_forward.1} parent=1 // pred_fallthru
      _
    %1834 = vsyncpa [#allocation5], 1

</llo_original>
